<compile_context>
chip_gen: v5e
topology: v5e:2x2
jax: 0.10.0
libtpu: 0.0.40
codegen_flags: <defaults>
</compile_context>

<pallas_src>
import math
import functools

import jax
import jax.numpy as jnp
from jax import lax
from jax.experimental import pallas as pl
from jax.experimental.pallas import tpu as pltpu


# ----------------------------------------------------------------------------
# tiling / spec helpers
# ----------------------------------------------------------------------------

def _round_up(n, m):
    return ((n + m - 1) // m) * m


def _choose_tile(n, target, align):
    """Pick a block size for a dim of length n.

    Returns (tile, padded_n). tile is either the full dim (always a legal block)
    or an `align`-aligned size; padded_n is a multiple of tile, so non-divisible
    dims (odd vocab sizes, seq lens) never force an oversized full-dim block.
    """
    if n <= target:
        return n, n
    best = 0
    t = align
    while t <= target:
        if n % t == 0:
            best = t
        t += align
    if best:
        return best, n
    tile = max((target // align) * align, align)
    return tile, _round_up(n, tile)


_SINGLE_BUFFER_OK = None


def _probe_kernel(x_ref, o_ref):
    o_ref[...] = x_ref[...] + 1.0


def _single_buffer_supported():
    """Runtime feature-detect pl.Buffered(1) (single-buffered constant blocks)."""
    global _SINGLE_BUFFER_OK
    if _SINGLE_BUFFER_OK is None:
        ok = False
        if hasattr(pl, "Buffered"):
            try:
                spec = pl.BlockSpec((8, 128), lambda i: (0, 0),
                                    pipeline_mode=pl.Buffered(1))
                y = pl.pallas_call(
                    _probe_kernel, grid=(1,), in_specs=[spec],
                    out_specs=pl.BlockSpec((8, 128), lambda i: (0, 0)),
                    out_shape=jax.ShapeDtypeStruct((8, 128), jnp.float32),
                )(jnp.zeros((8, 128), jnp.float32))
                jax.block_until_ready(y)
                ok = True
            except Exception:
                ok = False
        _SINGLE_BUFFER_OK = ok
    return _SINGLE_BUFFER_OK


def _const_spec(shape, index_map):
    """BlockSpec for blocks whose index never changes (weights / LN params).

    Single-buffered where supported: default double-buffering would allocate 2x
    VMEM for every weight block even though it is never re-fetched.
    """
    if _single_buffer_supported():
        return pl.BlockSpec(shape, index_map, pipeline_mode=pl.Buffered(1))
    return pl.BlockSpec(shape, index_map)


def _compiler_params(dim_semantics, vmem_bytes_est):
    """Explicit VMEM budget (clamped so it is valid on v5e / v6e / v7x)."""
    limit = int(min(max(2 * vmem_bytes_est + (8 << 20), 32 << 20), 64 << 20))
    return pltpu.CompilerParams(dimension_semantics=dim_semantics,
                                vmem_limit_bytes=limit)


# ----------------------------------------------------------------------------
# Pallas kernels
# ----------------------------------------------------------------------------

def _mha_ln_kernel(xq_ref, xkv_ref, kpm_ref, wq_ref, wkv_ref, wo_ref,
                   g_ref, b_ref, o_ref, kv_scr,
                   *, num_heads, causal, q_tile, d_model):
    """Fused MHA sublayer: LayerNorm(xq + out_proj(attn(xq, xkv, xkv))).

    xq_ref : (1, tq, D) f32   query-side input (also the residual)
    xkv_ref: (1, Lk, D) f32   key/value-side input
    kpm_ref: (1, 1, Lk) f32   key padding mask (1 = visible, 0 = masked)
    wq_ref : (D, D)    bf16   query projection (in, out), no bias
    wkv_ref: (D, 2D)   bf16   fused key|value projection
    wo_ref : (D, D)    bf16   output projection
    g/b    : (1, D)    f32    LayerNorm weight / bias
    kv_scr : (Lk, 2D)  bf16   persistent K|V buffer, filled once per batch elem
    """
    qi = pl.program_id(1)
    H = num_heads
    D = d_model
    hd = D // H
    scale = 1.0 / math.sqrt(hd)

    # --- K/V projection: once per batch element; stays resident across q-tiles.
    @pl.when(qi == 0)
    def _():
        kv = jnp.dot(xkv_ref[0].astype(jnp.bfloat16), wkv_ref[...],
                     preferred_element_type=jnp.float32)          # (Lk, 2D)
        kv_scr[...] = kv.astype(jnp.bfloat16)

    xq = xq_ref[0]                                                # (tq, D) f32
    tq = xq.shape[0]
    lk = kv_scr.shape[0]

    # Q projection per tile; fold 1/sqrt(hd) into q (tq*D elems, not H*tq*Lk).
    q_all = jnp.dot(xq.astype(jnp.bfloat16), wq_ref[...],
                    preferred_element_type=jnp.float32)
    q_all = (q_all * scale).astype(jnp.bfloat16)                  # (tq, D)

    # Additive mask built once per tile: key padding (+ causal), all in-kernel.
    visible = jnp.broadcast_to(kpm_ref[0] > 0.0, (tq, lk))        # (tq, Lk)
    if causal:
        q0 = qi * q_tile
        q_ids = q0 + lax.broadcasted_iota(jnp.int32, (tq, lk), 0)
        k_ids = lax.broadcasted_iota(jnp.int32, (tq, lk), 1)
        visible = jnp.logical_and(visible, k_ids <= q_ids)
    # masked_fill(mask == 0, -inf); finite sentinel keeps all-pad rows finite.
    bias = jnp.where(visible, 0.0, -1e30).astype(jnp.float32)     # (tq, Lk)

    # Per-head score/softmax/context on static lane slices of resident buffers.
    ctx_heads = []
    for h in range(H):
        q_h = q_all[:, h * hd:(h + 1) * hd]                       # (tq, hd) bf16
        k_h = kv_scr[:, h * hd:(h + 1) * hd]                      # (Lk, hd) bf16
        v_h = kv_scr[:, D + h * hd:D + (h + 1) * hd]              # (Lk, hd) bf16
        s = lax.dot_general(q_h, k_h, (((1,), (1,)), ((), ())),
                            preferred_element_type=jnp.float32)   # (tq, Lk) f32
        s = s + bias
        s = s - jnp.max(s, axis=-1, keepdims=True)
        p = jnp.exp(s)
        p = p * pl.reciprocal(jnp.sum(p, axis=-1, keepdims=True), approx=True)
        ctx_heads.append(jnp.dot(p.astype(jnp.bfloat16), v_h,
                                 preferred_element_type=jnp.float32))  # (tq, hd)

    # One lane-concat, then a single wide (tq, D) @ (D, D) output projection.
    ctx = jnp.concatenate(ctx_heads, axis=-1).astype(jnp.bfloat16)
    attn = jnp.dot(ctx, wo_ref[...], preferred_element_type=jnp.float32)

    # Fused residual add + LayerNorm (eps = 1e-5, PyTorch default), f32.
    y = xq + attn
    mu = jnp.mean(y, axis=-1, keepdims=True)
    var = jnp.mean((y - mu) ** 2, axis=-1, keepdims=True)
    o_ref[0] = (y - mu) * lax.rsqrt(var + 1e-5) * g_ref[...] + b_ref[...]


def _ffn_ln_kernel(x_ref, w1_ref, b1_ref, w2_ref, b2_ref, g_ref, beta_ref,
                   o_ref, acc_ref, xbf_ref):
    """Fused FFN sublayer: LayerNorm(x + (relu(x@W1+b1)@W2 + b2)).

    Grid = (row tiles, d_ff tiles); the d_ff axis is a reduction into acc_ref.
    The bf16 cast of x is cached in xbf_ref at ft==0 and reused across d_ff tiles.
    """
    ft = pl.program_id(1)

    @pl.when(ft == 0)
    def _():
        acc_ref[...] = jnp.zeros_like(acc_ref)
        xbf_ref[...] = x_ref[...].astype(jnp.bfloat16)

    h = jnp.dot(xbf_ref[...], w1_ref[...],
                preferred_element_type=jnp.float32) + b1_ref[...]
    h = jnp.maximum(h, 0.0)
    acc_ref[...] += jnp.dot(h.astype(jnp.bfloat16), w2_ref[...],
                            preferred_element_type=jnp.float32)

    @pl.when(ft == pl.num_programs(1) - 1)
    def _():
        y = x_ref[...] + acc_ref[...] + b2_ref[...]
        mu = jnp.mean(y, axis=-1, keepdims=True)
        var = jnp.mean((y - mu) ** 2, axis=-1, keepdims=True)
        o_ref[...] = (y - mu) * lax.rsqrt(var + 1e-5) * g_ref[...] + beta_ref[...]


def _ln_kernel(x_ref, g_ref, b_ref, o_ref):
    """Plain LayerNorm (final encoder/decoder norm, no residual stream)."""
    x = x_ref[...]
    mu = jnp.mean(x, axis=-1, keepdims=True)
    var = jnp.mean((x - mu) ** 2, axis=-1, keepdims=True)
    o_ref[...] = (x - mu) * lax.rsqrt(var + 1e-5) * g_ref[...] + b_ref[...]


def _proj_kernel(x_ref, w_ref, o_ref):
    """x @ W (no bias) — final vocab projection; bf16 MXU operands, f32 out."""
    o_ref[...] = jnp.dot(x_ref[...].astype(jnp.bfloat16), w_ref[...],
                         preferred_element_type=jnp.float32)


# ----------------------------------------------------------------------------
# Pallas wrappers
# ----------------------------------------------------------------------------

def mha_ln(x_q, x_kv, key_pad_mask, wq, wkv, wo, gamma, beta,
           *, num_heads, causal):
    B, Lq, D = x_q.shape
    Lk = x_kv.shape[1]
    tq, lq_pad = _choose_tile(Lq, 256, 8)
    if lq_pad != Lq:
        x_q = jnp.pad(x_q, ((0, 0), (0, lq_pad - Lq), (0, 0)))
    grid = (B, lq_pad // tq)

    flops = B * (4 * D * D * (lq_pad + Lk) + 4 * lq_pad * Lk * D)
    bytes_accessed = (4 * B * (2 * lq_pad + Lk) * D + 4 * B * Lk
                      + 8 * D * D + 4 * 2 * D)
    cost = pl.CostEstimate(flops=flops,
                           transcendentals=B * num_heads * lq_pad * Lk,
                           bytes_accessed=bytes_accessed)

    vmem_est = (2 * 4 * tq * D          # xq (double-buffered)
                + 2 * 4 * Lk * D        # xkv (double-buffered)
                + 2 * 4 * D * D         # wq + wo + wkv bf16, single-buffered
                + 2 * Lk * 2 * D        # K|V scratch bf16
                + 2 * 4 * tq * D        # output (double-buffered)
                + 3 * 4 * tq * Lk)      # score / prob / mask intermediates

    kern = functools.partial(_mha_ln_kernel, num_heads=num_heads,
                             causal=causal, q_tile=tq, d_model=D)
    out = pl.pallas_call(
        kern,
        grid=grid,
        in_specs=[
            pl.BlockSpec((1, tq, D), lambda b, qi: (b, qi, 0)),
            pl.BlockSpec((1, Lk, D), lambda b, qi: (b, 0, 0)),
            pl.BlockSpec((1, 1, Lk), lambda b, qi: (b, 0, 0)),
            _const_spec((D, D), lambda b, qi: (0, 0)),
            _const_spec((D, 2 * D), lambda b, qi: (0, 0)),
            _const_spec((D, D), lambda b, qi: (0, 0)),
            _const_spec((1, D), lambda b, qi: (0, 0)),
            _const_spec((1, D), lambda b, qi: (0, 0)),
        ],
        out_specs=pl.BlockSpec((1, tq, D), lambda b, qi: (b, qi, 0)),
        out_shape=jax.ShapeDtypeStruct((B, lq_pad, D), jnp.float32),
        scratch_shapes=[pltpu.VMEM((Lk, 2 * D), jnp.bfloat16)],
        # q-tile axis is "arbitrary": the per-batch K/V scratch carry needs
        # sequential q-tiles; the batch axis stays "parallel" for megacore.
        compiler_params=_compiler_params(("parallel", "arbitrary"), vmem_est),
        cost_estimate=cost,
    )(x_q, x_kv, key_pad_mask, wq, wkv, wo, gamma, beta)
    if lq_pad != Lq:
        out = out[:, :Lq, :]
    return out


def ffn_ln(x2d, w1, b1, w2, b2, gamma, beta):
    N, D = x2d.shape
    F = w1.shape[1]
    tr, n_pad = _choose_tile(N, 256, 8)
    tf, f_pad = _choose_tile(F, 1024, 128)
    if n_pad != N:
        x2d = jnp.pad(x2d, ((0, n_pad - N), (0, 0)))
    if f_pad != F:
        w1 = jnp.pad(w1, ((0, 0), (0, f_pad - F)))
        b1 = jnp.pad(b1, ((0, 0), (0, f_pad - F)))
        w2 = jnp.pad(w2, ((0, f_pad - F), (0, 0)))
    grid = (n_pad // tr, f_pad // tf)

    cost = pl.CostEstimate(
        flops=4 * n_pad * D * f_pad, transcendentals=0,
        bytes_accessed=4 * n_pad * D * 2 + 2 * 2 * D * f_pad + 4 * (f_pad + 3 * D))

    vmem_est = (3 * 4 * tr * D          # x (double-buffered) + output
                + 4 * tr * D            # f32 accumulator
                + 2 * tr * D            # bf16 x cache
                + 2 * 2 * 2 * D * tf    # w1 + w2 (double-buffered)
                + 4 * tr * tf           # hidden intermediate
                + 4 * (2 * tf + 6 * D))

    out = pl.pallas_call(
        _ffn_ln_kernel,
        grid=grid,
        in_specs=[
            pl.BlockSpec((tr, D), lambda r, f: (r, 0)),
            pl.BlockSpec((D, tf), lambda r, f: (0, f)),
            pl.BlockSpec((1, tf), lambda r, f: (0, f)),
            pl.BlockSpec((tf, D), lambda r, f: (f, 0)),
            _const_spec((1, D), lambda r, f: (0, 0)),
            _const_spec((1, D), lambda r, f: (0, 0)),
            _const_spec((1, D), lambda r, f: (0, 0)),
        ],
        out_specs=pl.BlockSpec((tr, D), lambda r, f: (r, 0)),
        out_shape=jax.ShapeDtypeStruct((n_pad, D), jnp.float32),
        scratch_shapes=[pltpu.VMEM((tr, D), jnp.float32),
                        pltpu.VMEM((tr, D), jnp.bfloat16)],
        compiler_params=_compiler_params(("parallel", "arbitrary"), vmem_est),
        cost_estimate=cost,
    )(x2d, w1, b1, w2, b2, gamma, beta)
    return out[:N] if n_pad != N else out


def layer_norm(x2d, gamma, beta):
    N, D = x2d.shape
    tr, n_pad = _choose_tile(N, 512, 8)
    if n_pad != N:
        x2d = jnp.pad(x2d, ((0, n_pad - N), (0, 0)))
    out = pl.pallas_call(
        _ln_kernel,
        grid=(n_pad // tr,),
        in_specs=[
            pl.BlockSpec((tr, D), lambda r: (r, 0)),
            _const_spec((1, D), lambda r: (0, 0)),
            _const_spec((1, D), lambda r: (0, 0)),
        ],
        out_specs=pl.BlockSpec((tr, D), lambda r: (r, 0)),
        out_shape=jax.ShapeDtypeStruct((n_pad, D), jnp.float32),
        compiler_params=pltpu.CompilerParams(dimension_semantics=("parallel",)),
    )(x2d, gamma, beta)
    return out[:N] if n_pad != N else out


def linear_nobias(x2d, w_bf16):
    N, D = x2d.shape
    V = w_bf16.shape[1]
    tr, n_pad = _choose_tile(N, 512, 8)
    tc, v_pad = _choose_tile(V, 2048, 128)
    if n_pad != N:
        x2d = jnp.pad(x2d, ((0, n_pad - N), (0, 0)))
    if v_pad != V:
        w_bf16 = jnp.pad(w_bf16, ((0, 0), (0, v_pad - V)))
    grid = (n_pad // tr, v_pad // tc)

    cost = pl.CostEstimate(flops=2 * n_pad * D * v_pad, transcendentals=0,
                           bytes_accessed=4 * n_pad * D + 2 * D * v_pad
                           + 4 * n_pad * v_pad)
    vmem_est = 2 * (4 * tr * D + 2 * D * tc + 4 * tr * tc)

    out = pl.pallas_call(
        _proj_kernel,
        grid=grid,
        in_specs=[
            pl.BlockSpec((tr, D), lambda r, c: (r, 0)),
            pl.BlockSpec((D, tc), lambda r, c: (0, c)),
        ],
        out_specs=pl.BlockSpec((tr, tc), lambda r, c: (r, c)),
        out_shape=jax.ShapeDtypeStruct((n_pad, v_pad), jnp.float32),
        compiler_params=_compiler_params(("parallel", "parallel"), vmem_est),
        cost_estimate=cost,
    )(x2d, w_bf16)
    if n_pad != N or v_pad != V:
        out = out[:N, :V]
    return out


# ----------------------------------------------------------------------------
# Model (parameter setup + glue in plain JAX, hot paths in Pallas)
# ----------------------------------------------------------------------------

def sinusoidal_pe(max_len, d_model):
    position = jnp.arange(max_len, dtype=jnp.float32)[:, None]
    div_item = jnp.exp(jnp.arange(0, d_model, 2, dtype=jnp.float32)
                       * (-math.log(10000.0) / d_model))
    pe = jnp.zeros((max_len, d_model), jnp.float32)
    pe = pe.at[:, 0::2].set(jnp.sin(position * div_item))
    pe = pe.at[:, 1::2].set(jnp.cos(position * div_item))
    return pe


def _uniform(key, shape, fan_in, dtype=jnp.float32):
    bound = 1.0 / math.sqrt(fan_in)
    return jax.random.uniform(key, shape, jnp.float32, -bound, bound).astype(dtype)


def init_attn_params(key, d_model):
    ks = jax.random.split(key, 4)
    wq = _uniform(ks[0], (d_model, d_model), d_model, jnp.bfloat16)
    wk = _uniform(ks[1], (d_model, d_model), d_model)
    wv = _uniform(ks[2], (d_model, d_model), d_model)
    wkv = jnp.concatenate([wk, wv], axis=1).astype(jnp.bfloat16)   # fused K|V
    wo = _uniform(ks[3], (d_model, d_model), d_model, jnp.bfloat16)
    return {"wq": wq, "wkv": wkv, "wo": wo}


def init_ffn_params(key, d_model, d_ff):
    ks = jax.random.split(key, 4)
    return {
        "w1": _uniform(ks[0], (d_model, d_ff), d_model, jnp.bfloat16),
        "b1": _uniform(ks[1], (1, d_ff), d_model),
        "w2": _uniform(ks[2], (d_ff, d_model), d_ff, jnp.bfloat16),
        "b2": _uniform(ks[3], (1, d_model), d_ff),
    }


def init_ln_params(d_model):
    return {"g": jnp.ones((1, d_model), jnp.float32),
            "b": jnp.zeros((1, d_model), jnp.float32)}


def init_model_params(key, *, num_enc, num_dec, d_model, d_ff,
                      src_vocab, tgt_vocab):
    keys = jax.random.split(key, 6)
    enc_embed = jax.random.normal(keys[0], (src_vocab, d_model), jnp.float32)
    enc_embed = enc_embed.at[0].set(0.0)      # padding_idx=0
    dec_embed = jax.random.normal(keys[1], (tgt_vocab, d_model), jnp.float32)
    dec_embed = dec_embed.at[0].set(0.0)

    enc_layers = []
    for k in jax.random.split(keys[2], num_enc):
        k1, k2 = jax.random.split(k)
        enc_layers.append({
            "attn": init_attn_params(k1, d_model),
            "ffn": init_ffn_params(k2, d_model, d_ff),
            "ln1": init_ln_params(d_model),
            "ln2": init_ln_params(d_model),
        })

    dec_layers = []
    for k in jax.random.split(keys[3], num_dec):
        k1, k2, k3 = jax.random.split(k, 3)
        dec_layers.append({
            "self_attn": init_attn_params(k1, d_model),
            "cross_attn": init_attn_params(k2, d_model),
            "ffn": init_ffn_params(k3, d_model, d_ff),
            "ln1": init_ln_params(d_model),
            "ln2": init_ln_params(d_model),
            "ln3": init_ln_params(d_model),
        })

    proj_w = _uniform(keys[4], (d_model, tgt_vocab), d_model, jnp.bfloat16)

    return {
        "enc_embed": enc_embed,
        "dec_embed": dec_embed,
        "enc_layers": enc_layers,
        "dec_layers": dec_layers,
        "enc_norm": init_ln_params(d_model),
        "dec_norm": init_ln_params(d_model),
        "proj_w": proj_w,
        "pe": sinusoidal_pe(512, d_model),
    }


def encoder_layer_fwd(x, src_kpm, p, num_heads):
    B, L, D = x.shape
    x = mha_ln(x, x, src_kpm,
               p["attn"]["wq"], p["attn"]["wkv"], p["attn"]["wo"],
               p["ln1"]["g"], p["ln1"]["b"], num_heads=num_heads, causal=False)
    x = ffn_ln(x.reshape(-1, D), p["ffn"]["w1"], p["ffn"]["b1"],
               p["ffn"]["w2"], p["ffn"]["b2"],
               p["ln2"]["g"], p["ln2"]["b"]).reshape(B, L, D)
    return x


def decoder_layer_fwd(x, memory, tgt_kpm, src_kpm, p, num_heads):
    B, Lt, D = x.shape
    x = mha_ln(x, x, tgt_kpm,
               p["self_attn"]["wq"], p["self_attn"]["wkv"], p["self_attn"]["wo"],
               p["ln1"]["g"], p["ln1"]["b"], num_heads=num_heads, causal=True)
    x = mha_ln(x, memory, src_kpm,
               p["cross_attn"]["wq"], p["cross_attn"]["wkv"], p["cross_attn"]["wo"],
               p["ln2"]["g"], p["ln2"]["b"], num_heads=num_heads, causal=False)
    x = ffn_ln(x.reshape(-1, D), p["ffn"]["w1"], p["ffn"]["b1"],
               p["ffn"]["w2"], p["ffn"]["b2"],
               p["ln3"]["g"], p["ln3"]["b"]).reshape(B, Lt, D)
    return x


def seq2seq_transformer_fwd(params, src_ids, tgt_ids, *, num_heads, pad_id=0):
    B, Ls = src_ids.shape
    _, Lt = tgt_ids.shape
    D = params["enc_embed"].shape[1]
    V = params["proj_w"].shape[1]

    # Key-padding vectors only (1 = visible); the causal part is built in-kernel.
    src_kpm = (src_ids != pad_id).astype(jnp.float32)[:, None, :]   # (B, 1, Ls)
    tgt_kpm = (tgt_ids != pad_id).astype(jnp.float32)[:, None, :]   # (B, 1, Lt)

    # ---- encoder ----
    x = params["enc_embed"][src_ids] + params["pe"][None, :Ls, :]
    for p in params["enc_layers"]:
        x = encoder_layer_fwd(x, src_kpm, p, num_heads)
    memory = layer_norm(x.reshape(-1, D),
                        params["enc_norm"]["g"],
                        params["enc_norm"]["b"]).reshape(B, Ls, D)

    # ---- decoder ----
    y = params["dec_embed"][tgt_ids] + params["pe"][None, :Lt, :]
    for p in params["dec_layers"]:
        y = decoder_layer_fwd(y, memory, tgt_kpm, src_kpm, p, num_heads)
    dec_out = layer_norm(y.reshape(-1, D),
                         params["dec_norm"]["g"],
                         params["dec_norm"]["b"])

    # ---- generator (vocab projection, bias=False) ----
    logits = linear_nobias(dec_out, params["proj_w"])
    return logits.reshape(B, Lt, V)


# ----------------------------------------------------------------------------
# Example run
# ----------------------------------------------------------------------------

if __name__ == "__main__":
    # small config: 2 enc layers, 2 dec layers, d_model=32, 4 heads, d_ff=64
    B, Ls, Lt = 2, 8, 8
    D, NHEAD, DFF = 32, 4, 64
    SRC_VOCAB, TGT_VOCAB = 50, 60
    PAD_ID = 0

    key = jax.random.PRNGKey(0)
    kp, ks, kt = jax.random.split(key, 3)

    params = init_model_params(kp, num_enc=2, num_dec=2, d_model=D, d_ff=DFF,
                               src_vocab=SRC_VOCAB, tgt_vocab=TGT_VOCAB)

    # token ids in [1, vocab); add trailing padding on one sequence
    src_ids = jax.random.randint(ks, (B, Ls), 1, SRC_VOCAB, dtype=jnp.int32)
    tgt_ids = jax.random.randint(kt, (B, Lt), 1, TGT_VOCAB, dtype=jnp.int32)
    src_ids = src_ids.at[1, 6:].set(PAD_ID)
    tgt_ids = tgt_ids.at[1, 5:].set(PAD_ID)

    # TODO(synk): PyTorch masked_fill(-inf) yields NaN rows for fully-masked
    # (all-pad) queries; we use a finite -1e30 sentinel so those rows stay finite.
    logits = seq2seq_transformer_fwd(params, src_ids, tgt_ids,
                                     num_heads=NHEAD, pad_id=PAD_ID)
    logits = jax.block_until_ready(logits)

    assert logits.shape == (B, Lt, TGT_VOCAB)
    assert bool(jnp.all(jnp.isfinite(logits)))
    print("KERNEL_OK")
</pallas_src>

<mosaic_0001>
module attributes {stable_mosaic.version = 11 : i64} {
  func.func @_probe_kernel(%arg0: i32, %arg1: memref<8x128xf32, #tpu.memory_space<vmem>>, %arg2: memref<8x128xf32, #tpu.memory_space<vmem>>) attributes {dimension_semantics = [#tpu.dimension_semantics<arbitrary>], iteration_bounds = array<i64: 1>, scalar_prefetch = 0 : i64, scratch_operands = 0 : i64, tpu.core_type = #tpu.core_type<tc>, window_params = [{pipeline_mode = #tpu.pipeline_mode<synchronous>, transform_indices = @transform_0, window_bounds = array<i64: 8, 128>}, {pipeline_mode = #tpu.pipeline_mode<synchronous>, transform_indices = @transform_1, window_bounds = array<i64: 8, 128>}]} {
    %c0 = arith.constant 0 : index
    %c0_0 = arith.constant 0 : index
    %0 = vector.load %arg1[%c0, %c0_0] : memref<8x128xf32, #tpu.memory_space<vmem>>, vector<8x128xf32>
    %cst = arith.constant 1.000000e+00 : f32
    %1 = vector.broadcast %cst : f32 to vector<8x128xf32>
    %2 = arith.addf %0, %1 : vector<8x128xf32>
    %c0_1 = arith.constant 0 : index
    %c0_2 = arith.constant 0 : index
    %3 = vector.load %arg2[%c0_1, %c0_2] : memref<8x128xf32, #tpu.memory_space<vmem>>, vector<8x128xf32>
    tpu.vector_store %arg2[%c0_1, %c0_2], %2 {strides = array<i32>} : memref<8x128xf32, #tpu.memory_space<vmem>>, vector<8x128xf32>,
    return
  }
  func.func @transform_0(%arg0: i32) -> (i32, i32) {
    %c0_i32 = arith.constant 0 : i32
    %c0_i32_0 = arith.constant 0 : i32
    %c0_i32_1 = arith.constant 0 : i32
    return %c0_i32, %c0_i32_0 : i32, i32
  }
  func.func @transform_1(%arg0: i32) -> (i32, i32) {
    %c0_i32 = arith.constant 0 : i32
    %c0_i32_0 = arith.constant 0 : i32
    %c0_i32_1 = arith.constant 0 : i32
    return %c0_i32, %c0_i32_0 : i32, i32
  }
}

module attributes {stable_mosaic.version = 11 : i64} {
  func.func @_mha_ln_kernel(%arg0: i32, %arg1: i32, %arg2: memref<1x8x32xf32, #tpu.memory_space<vmem>>, %arg3: memref<1x8x32xf32, #tpu.memory_space<vmem>>, %arg4: memref<1x1x8xf32, #tpu.memory_space<vmem>>, %arg5: memref<32x32xbf16, #tpu.memory_space<vmem>>, %arg6: memref<32x64xbf16, #tpu.memory_space<vmem>>, %arg7: memref<32x32xbf16, #tpu.memory_space<vmem>>, %arg8: memref<1x32xf32, #tpu.memory_space<vmem>>, %arg9: memref<1x32xf32, #tpu.memory_space<vmem>>, %arg10: memref<1x8x32xf32, #tpu.memory_space<vmem>>, %arg11: memref<8x64xbf16, #tpu.memory_space<vmem>>) attributes {dimension_semantics = [#tpu.dimension_semantics<parallel>, #tpu.dimension_semantics<arbitrary>], iteration_bounds = array<i64: 2, 1>, scalar_prefetch = 0 : i64, scratch_operands = 1 : i64, tpu.core_type = #tpu.core_type<tc>, window_params = [{transform_indices = @transform_0, window_bounds = array<i64: 1, 8, 32>}, {transform_indices = @transform_1, window_bounds = array<i64: 1, 8, 32>}, {transform_indices = @transform_2, window_bounds = array<i64: 1, 1, 8>}, {pipeline_mode = #tpu.pipeline_mode<synchronous>, transform_indices = @transform_3, window_bounds = array<i64: 32, 32>}, {pipeline_mode = #tpu.pipeline_mode<synchronous>, transform_indices = @transform_4, window_bounds = array<i64: 32, 64>}, {pipeline_mode = #tpu.pipeline_mode<synchronous>, transform_indices = @transform_5, window_bounds = array<i64: 32, 32>}, {pipeline_mode = #tpu.pipeline_mode<synchronous>, transform_indices = @transform_6, window_bounds = array<i64: 1, 32>}, {pipeline_mode = #tpu.pipeline_mode<synchronous>, transform_indices = @transform_7, window_bounds = array<i64: 1, 32>}, {transform_indices = @transform_8, window_bounds = array<i64: 1, 8, 32>}]} {
    %c0_i32 = arith.constant 0 : i32
    %0 = arith.cmpi eq, %arg1, %c0_i32 : i32
    %1 = arith.extui %0 : i1 to i32
    %c0_i32_0 = arith.constant 0 : i32
    %2 = arith.cmpi ne, %1, %c0_i32_0 : i32
    scf.if %2 {
      %c0_52 = arith.constant 0 : index
      %c0_53 = arith.constant 0 : index
      %c0_54 = arith.constant 0 : index
      %120 = vector.load %arg3[%c0_52, %c0_53, %c0_54] : memref<1x8x32xf32, #tpu.memory_space<vmem>>, vector<1x8x32xf32>
      %121 = vector.shape_cast %120 : vector<1x8x32xf32> to vector<8x32xf32>
      %122 = arith.truncf %121 : vector<8x32xf32> to vector<8x32xbf16>
      %c0_55 = arith.constant 0 : index
      %c0_56 = arith.constant 0 : index
      %123 = vector.load %arg6[%c0_55, %c0_56] : memref<32x64xbf16, #tpu.memory_space<vmem>>, vector<32x64xbf16>
      %cst_57 = arith.constant dense<0.000000e+00> : vector<8x64xf32>
      %124 = tpu.matmul %122, %123, %cst_57 {dimension_numbers = #tpu.dot_dimension_numbers<[1], [0], [0], [1], [0, 0, 1, 1], [], []>} : vector<8x32xbf16>, vector<32x64xbf16>, vector<8x64xf32> -> vector<8x64xf32>
      %125 = arith.truncf %124 : vector<8x64xf32> to vector<8x64xbf16>
      %c0_58 = arith.constant 0 : index
      %c0_59 = arith.constant 0 : index
      %126 = vector.load %arg11[%c0_58, %c0_59] : memref<8x64xbf16, #tpu.memory_space<vmem>>, vector<8x64xbf16>
      tpu.vector_store %arg11[%c0_58, %c0_59], %125 {strides = array<i32>} : memref<8x64xbf16, #tpu.memory_space<vmem>>, vector<8x64xbf16>,
    } else {
    }
    %c0 = arith.constant 0 : index
    %c0_1 = arith.constant 0 : index
    %c0_2 = arith.constant 0 : index
    %3 = vector.load %arg2[%c0, %c0_1, %c0_2] : memref<1x8x32xf32, #tpu.memory_space<vmem>>, vector<1x8x32xf32>
    %4 = vector.shape_cast %3 : vector<1x8x32xf32> to vector<8x32xf32>
    %5 = arith.truncf %4 : vector<8x32xf32> to vector<8x32xbf16>
    %c0_3 = arith.constant 0 : index
    %c0_4 = arith.constant 0 : index
    %6 = vector.load %arg5[%c0_3, %c0_4] : memref<32x32xbf16, #tpu.memory_space<vmem>>, vector<32x32xbf16>
    %cst = arith.constant dense<0.000000e+00> : vector<8x32xf32>
    %7 = tpu.matmul %5, %6, %cst {dimension_numbers = #tpu.dot_dimension_numbers<[1], [0], [0], [1], [0, 0, 1, 1], [], []>} : vector<8x32xbf16>, vector<32x32xbf16>, vector<8x32xf32> -> vector<8x32xf32>
    %cst_5 = arith.constant 0.353553385 : f32
    %8 = vector.broadcast %cst_5 : f32 to vector<8x32xf32>
    %9 = arith.mulf %7, %8 : vector<8x32xf32>
    %10 = arith.truncf %9 : vector<8x32xf32> to vector<8x32xbf16>
    %c0_6 = arith.constant 0 : index
    %c0_7 = arith.constant 0 : index
    %c0_8 = arith.constant 0 : index
    %11 = vector.load %arg4[%c0_6, %c0_7, %c0_8] : memref<1x1x8xf32, #tpu.memory_space<vmem>>, vector<1x1x8xf32>
    %12 = vector.shape_cast %11 : vector<1x1x8xf32> to vector<1x8xf32>
    %cst_9 = arith.constant 0.000000e+00 : f32
    %13 = vector.broadcast %cst_9 : f32 to vector<1x8xf32>
    %14 = arith.cmpf ogt, %12, %13 : vector<1x8xf32>
    %15 = vector.shape_cast %14 : vector<1x8xi1> to vector<1x8xi1>
    %16 = vector.broadcast %15 : vector<1x8xi1> to vector<8x8xi1>
    %cst_10 = arith.constant 0.000000e+00 : f32
    %cst_11 = arith.constant -1.000000e+30 : f32
    %17 = vector.broadcast %cst_10 : f32 to vector<8x8xf32>
    %18 = vector.broadcast %cst_11 : f32 to vector<8x8xf32>
    %19 = arith.select %16, %17, %18 : vector<8x8xi1>, vector<8x8xf32>
    %20 = vector.extract_strided_slice %10 {offsets = [0, 0], sizes = [8, 8], strides = [1, 1]} : vector<8x32xbf16> to vector<8x8xbf16>
    %c0_12 = arith.constant 0 : index
    %c0_13 = arith.constant 0 : index
    %21 = vector.load %arg11[%c0_12, %c0_13] : memref<8x64xbf16, #tpu.memory_space<vmem>>, vector<8x8xbf16>
    %c0_14 = arith.constant 0 : index
    %c32 = arith.constant 32 : index
    %22 = vector.load %arg11[%c0_14, %c32] : memref<8x64xbf16, #tpu.memory_space<vmem>>, vector<8x8xbf16>
    %cst_15 = arith.constant dense<0.000000e+00> : vector<8x8xf32>
    %23 = tpu.matmul %20, %21, %cst_15 {dimension_numbers = #tpu.dot_dimension_numbers<[1], [1], [0], [0], [0, 0, 1, 0], [], []>} : vector<8x8xbf16>, vector<8x8xbf16>, vector<8x8xf32> -> vector<8x8xf32>
    %24 = arith.addf %23, %19 : vector<8x8xf32>
    %cst_16 = arith.constant dense<0xFF800000> : vector<8xf32>
    %25 = vector.multi_reduction <maximumf>, %24, %cst_16 [1] : vector<8x8xf32> to vector<8xf32>
    %26 = vector.shape_cast %25 : vector<8xf32> to vector<8x1xf32>
    %27 = vector.broadcast %26 : vector<8x1xf32> to vector<8x8xf32>
    %28 = arith.subf %24, %27 : vector<8x8xf32>
    %29 = math.exp %28 : vector<8x8xf32>
    %cst_17 = arith.constant dense<0.000000e+00> : vector<8xf32>
    %30 = vector.multi_reduction <add>, %29, %cst_17 [1] : vector<8x8xf32> to vector<8xf32>
    %31 = vector.shape_cast %30 : vector<8xf32> to vector<8x1xf32>
    %32 = tpu.reciprocal %31 {approx = true} : vector<8x1xf32> -> vector<8x1xf32>
    %33 = vector.broadcast %32 : vector<8x1xf32> to vector<8x8xf32>
    %34 = arith.mulf %29, %33 : vector<8x8xf32>
    %35 = arith.truncf %34 : vector<8x8xf32> to vector<8x8xbf16>
    %cst_18 = arith.constant dense<0.000000e+00> : vector<8x8xf32>
    %36 = tpu.matmul %35, %22, %cst_18 {dimension_numbers = #tpu.dot_dimension_numbers<[1], [0], [0], [1], [0, 0, 1, 1], [], []>} : vector<8x8xbf16>, vector<8x8xbf16>, vector<8x8xf32> -> vector<8x8xf32>
    %37 = vector.extract_strided_slice %10 {offsets = [0, 8], sizes = [8, 8], strides = [1, 1]} : vector<8x32xbf16> to vector<8x8xbf16>
    %c0_19 = arith.constant 0 : index
    %c8 = arith.constant 8 : index
    %38 = vector.load %arg11[%c0_19, %c8] : memref<8x64xbf16, #tpu.memory_space<vmem>>, vector<8x8xbf16>
    %c0_20 = arith.constant 0 : index
    %c40 = arith.constant 40 : index
    %39 = vector.load %arg11[%c0_20, %c40] : memref<8x64xbf16, #tpu.memory_space<vmem>>, vector<8x8xbf16>
    %cst_21 = arith.constant dense<0.000000e+00> : vector<8x8xf32>
    %40 = tpu.matmul %37, %38, %cst_21 {dimension_numbers = #tpu.dot_dimension_numbers<[1], [1], [0], [0], [0, 0, 1, 0], [], []>} : vector<8x8xbf16>, vector<8x8xbf16>, vector<8x8xf32> -> vector<8x8xf32>
    %41 = arith.addf %40, %19 : vector<8x8xf32>
    %cst_22 = arith.constant dense<0xFF800000> : vector<8xf32>
    %42 = vector.multi_reduction <maximumf>, %41, %cst_22 [1] : vector<8x8xf32> to vector<8xf32>
    %43 = vector.shape_cast %42 : vector<8xf32> to vector<8x1xf32>
    %44 = vector.broadcast %43 : vector<8x1xf32> to vector<8x8xf32>
    %45 = arith.subf %41, %44 : vector<8x8xf32>
    %46 = math.exp %45 : vector<8x8xf32>
    %cst_23 = arith.constant dense<0.000000e+00> : vector<8xf32>
    %47 = vector.multi_reduction <add>, %46, %cst_23 [1] : vector<8x8xf32> to vector<8xf32>
    %48 = vector.shape_cast %47 : vector<8xf32> to vector<8x1xf32>
    %49 = tpu.reciprocal %48 {approx = true} : vector<8x1xf32> -> vector<8x1xf32>
    %50 = vector.broadcast %49 : vector<8x1xf32> to vector<8x8xf32>
    %51 = arith.mulf %46, %50 : vector<8x8xf32>
    %52 = arith.truncf %51 : vector<8x8xf32> to vector<8x8xbf16>
    %cst_24 = arith.constant dense<0.000000e+00> : vector<8x8xf32>
    %53 = tpu.matmul %52, %39, %cst_24 {dimension_numbers = #tpu.dot_dimension_numbers<[1], [0], [0], [1], [0, 0, 1, 1], [], []>} : vector<8x8xbf16>, vector<8x8xbf16>, vector<8x8xf32> -> vector<8x8xf32>
    %54 = vector.extract_strided_slice %10 {offsets = [0, 16], sizes = [8, 8], strides = [1, 1]} : vector<8x32xbf16> to vector<8x8xbf16>
    %c0_25 = arith.constant 0 : index
    %c16 = arith.constant 16 : index
    %55 = vector.load %arg11[%c0_25, %c16] : memref<8x64xbf16, #tpu.memory_space<vmem>>, vector<8x8xbf16>
    %c0_26 = arith.constant 0 : index
    %c48 = arith.constant 48 : index
    %56 = vector.load %arg11[%c0_26, %c48] : memref<8x64xbf16, #tpu.memory_space<vmem>>, vector<8x8xbf16>
    %cst_27 = arith.constant dense<0.000000e+00> : vector<8x8xf32>
    %57 = tpu.matmul %54, %55, %cst_27 {dimension_numbers = #tpu.dot_dimension_numbers<[1], [1], [0], [0], [0, 0, 1, 0], [], []>} : vector<8x8xbf16>, vector<8x8xbf16>, vector<8x8xf32> -> vector<8x8xf32>
    %58 = arith.addf %57, %19 : vector<8x8xf32>
    %cst_28 = arith.constant dense<0xFF800000> : vector<8xf32>
    %59 = vector.multi_reduction <maximumf>, %58, %cst_28 [1] : vector<8x8xf32> to vector<8xf32>
    %60 = vector.shape_cast %59 : vector<8xf32> to vector<8x1xf32>
    %61 = vector.broadcast %60 : vector<8x1xf32> to vector<8x8xf32>
    %62 = arith.subf %58, %61 : vector<8x8xf32>
    %63 = math.exp %62 : vector<8x8xf32>
    %cst_29 = arith.constant dense<0.000000e+00> : vector<8xf32>
    %64 = vector.multi_reduction <add>, %63, %cst_29 [1] : vector<8x8xf32> to vector<8xf32>
    %65 = vector.shape_cast %64 : vector<8xf32> to vector<8x1xf32>
    %66 = tpu.reciprocal %65 {approx = true} : vector<8x1xf32> -> vector<8x1xf32>
    %67 = vector.broadcast %66 : vector<8x1xf32> to vector<8x8xf32>
    %68 = arith.mulf %63, %67 : vector<8x8xf32>
    %69 = arith.truncf %68 : vector<8x8xf32> to vector<8x8xbf16>
    %cst_30 = arith.constant dense<0.000000e+00> : vector<8x8xf32>
    %70 = tpu.matmul %69, %56, %cst_30 {dimension_numbers = #tpu.dot_dimension_numbers<[1], [0], [0], [1], [0, 0, 1, 1], [], []>} : vector<8x8xbf16>, vector<8x8xbf16>, vector<8x8xf32> -> vector<8x8xf32>
    %71 = vector.extract_strided_slice %10 {offsets = [0, 24], sizes = [8, 8], strides = [1, 1]} : vector<8x32xbf16> to vector<8x8xbf16>
    %c0_31 = arith.constant 0 : index
    %c24 = arith.constant 24 : index
    %72 = vector.load %arg11[%c0_31, %c24] : memref<8x64xbf16, #tpu.memory_space<vmem>>, vector<8x8xbf16>
    %c0_32 = arith.constant 0 : index
    %c56 = arith.constant 56 : index
    %73 = vector.load %arg11[%c0_32, %c56] : memref<8x64xbf16, #tpu.memory_space<vmem>>, vector<8x8xbf16>
    %cst_33 = arith.constant dense<0.000000e+00> : vector<8x8xf32>
    %74 = tpu.matmul %71, %72, %cst_33 {dimension_numbers = #tpu.dot_dimension_numbers<[1], [1], [0], [0], [0, 0, 1, 0], [], []>} : vector<8x8xbf16>, vector<8x8xbf16>, vector<8x8xf32> -> vector<8x8xf32>
    %75 = arith.addf %74, %19 : vector<8x8xf32>
    %cst_34 = arith.constant dense<0xFF800000> : vector<8xf32>
    %76 = vector.multi_reduction <maximumf>, %75, %cst_34 [1] : vector<8x8xf32> to vector<8xf32>
    %77 = vector.shape_cast %76 : vector<8xf32> to vector<8x1xf32>
    %78 = vector.broadcast %77 : vector<8x1xf32> to vector<8x8xf32>
    %79 = arith.subf %75, %78 : vector<8x8xf32>
    %80 = math.exp %79 : vector<8x8xf32>
    %cst_35 = arith.constant dense<0.000000e+00> : vector<8xf32>
    %81 = vector.multi_reduction <add>, %80, %cst_35 [1] : vector<8x8xf32> to vector<8xf32>
    %82 = vector.shape_cast %81 : vector<8xf32> to vector<8x1xf32>
    %83 = tpu.reciprocal %82 {approx = true} : vector<8x1xf32> -> vector<8x1xf32>
    %84 = vector.broadcast %83 : vector<8x1xf32> to vector<8x8xf32>
    %85 = arith.mulf %80, %84 : vector<8x8xf32>
    %86 = arith.truncf %85 : vector<8x8xf32> to vector<8x8xbf16>
    %cst_36 = arith.constant dense<0.000000e+00> : vector<8x8xf32>
    %87 = tpu.matmul %86, %73, %cst_36 {dimension_numbers = #tpu.dot_dimension_numbers<[1], [0], [0], [1], [0, 0, 1, 1], [], []>} : vector<8x8xbf16>, vector<8x8xbf16>, vector<8x8xf32> -> vector<8x8xf32>
    %88 = tpu.concatenate %36, %53, %70, %87 in 1 : vector<8x8xf32>, vector<8x8xf32>, vector<8x8xf32>, vector<8x8xf32> -> vector<8x32xf32>
    %89 = arith.truncf %88 : vector<8x32xf32> to vector<8x32xbf16>
    %c0_37 = arith.constant 0 : index
    %c0_38 = arith.constant 0 : index
    %90 = vector.load %arg7[%c0_37, %c0_38] : memref<32x32xbf16, #tpu.memory_space<vmem>>, vector<32x32xbf16>
    %cst_39 = arith.constant dense<0.000000e+00> : vector<8x32xf32>
    %91 = tpu.matmul %89, %90, %cst_39 {dimension_numbers = #tpu.dot_dimension_numbers<[1], [0], [0], [1], [0, 0, 1, 1], [], []>} : vector<8x32xbf16>, vector<32x32xbf16>, vector<8x32xf32> -> vector<8x32xf32>
    %92 = arith.addf %4, %91 : vector<8x32xf32>
    %cst_40 = arith.constant dense<0.000000e+00> : vector<8xf32>
    %93 = vector.multi_reduction <add>, %92, %cst_40 [1] : vector<8x32xf32> to vector<8xf32>
    %94 = vector.shape_cast %93 : vector<8xf32> to vector<8x1xf32>
    %cst_41 = arith.constant 3.200000e+01 : f32
    %95 = vector.broadcast %cst_41 : f32 to vector<8x1xf32>
    %96 = arith.divf %94, %95 : vector<8x1xf32>
    %97 = vector.broadcast %96 : vector<8x1xf32> to vector<8x32xf32>
    %98 = arith.subf %92, %97 : vector<8x32xf32>
    %99 = arith.mulf %98, %98 : vector<8x32xf32>
    %cst_42 = arith.constant dense<0.000000e+00> : vector<8xf32>
    %100 = vector.multi_reduction <add>, %99, %cst_42 [1] : vector<8x32xf32> to vector<8xf32>
    %101 = vector.shape_cast %100 : vector<8xf32> to vector<8x1xf32>
    %cst_43 = arith.constant 3.200000e+01 : f32
    %102 = vector.broadcast %cst_43 : f32 to vector<8x1xf32>
    %103 = arith.divf %101, %102 : vector<8x1xf32>
    %104 = vector.broadcast %96 : vector<8x1xf32> to vector<8x32xf32>
    %105 = arith.subf %92, %104 : vector<8x32xf32>
    %cst_44 = arith.constant 9.99999974E-6 : f32
    %106 = vector.broadcast %cst_44 : f32 to vector<8x1xf32>
    %107 = arith.addf %103, %106 : vector<8x1xf32>
    %108 = math.rsqrt %107 : vector<8x1xf32>
    %109 = vector.broadcast %108 : vector<8x1xf32> to vector<8x32xf32>
    %110 = arith.mulf %105, %109 : vector<8x32xf32>
    %c0_45 = arith.constant 0 : index
    %c0_46 = arith.constant 0 : index
    %111 = vector.load %arg8[%c0_45, %c0_46] : memref<1x32xf32, #tpu.memory_space<vmem>>, vector<1x32xf32>
    %112 = vector.broadcast %111 : vector<1x32xf32> to vector<8x32xf32>
    %113 = arith.mulf %110, %112 : vector<8x32xf32>
    %c0_47 = arith.constant 0 : index
    %c0_48 = arith.constant 0 : index
    %114 = vector.load %arg9[%c0_47, %c0_48] : memref<1x32xf32, #tpu.memory_space<vmem>>, vector<1x32xf32>
    %115 = vector.broadcast %114 : vector<1x32xf32> to vector<8x32xf32>
    %116 = arith.addf %113, %115 : vector<8x32xf32>
    %c0_49 = arith.constant 0 : index
    %c0_50 = arith.constant 0 : index
    %c0_51 = arith.constant 0 : index
    %117 = vector.load %arg10[%c0_49, %c0_50, %c0_51] : memref<1x8x32xf32, #tpu.memory_space<vmem>>, vector<1x8x32xf32>
    %118 = vector.shape_cast %117 : vector<1x8x32xf32> to vector<8x32xf32>
    %119 = vector.shape_cast %116 : vector<8x32xf32> to vector<1x8x32xf32>
    tpu.vector_store %arg10[%c0_49, %c0_50, %c0_51], %119 {strides = array<i32>} : memref<1x8x32xf32, #tpu.memory_space<vmem>>, vector<1x8x32xf32>,
    return
  }
  func.func @transform_0(%arg0: i32, %arg1: i32) -> (i32, i32, i32) {
    %c0_i32 = arith.constant 0 : i32
    %c0_i32_0 = arith.constant 0 : i32
    return %arg0, %arg1, %c0_i32 : i32, i32, i32
  }
  func.func @transform_1(%arg0: i32, %arg1: i32) -> (i32, i32, i32) {
    %c0_i32 = arith.constant 0 : i32
    %c0_i32_0 = arith.constant 0 : i32
    %c0_i32_1 = arith.constant 0 : i32
    return %arg0, %c0_i32, %c0_i32_0 : i32, i32, i32
  }
  func.func @transform_2(%arg0: i32, %arg1: i32) -> (i32, i32, i32) {
    %c0_i32 = arith.constant 0 : i32
    %c0_i32_0 = arith.constant 0 : i32
    %c0_i32_1 = arith.constant 0 : i32
    return %arg0, %c0_i32, %c0_i32_0 : i32, i32, i32
  }
  func.func @transform_3(%arg0: i32, %arg1: i32) -> (i32, i32) {
    %c0_i32 = arith.constant 0 : i32
    %c0_i32_0 = arith.constant 0 : i32
    %c0_i32_1 = arith.constant 0 : i32
    return %c0_i32, %c0_i32_0 : i32, i32
  }
  func.func @transform_4(%arg0: i32, %arg1: i32) -> (i32, i32) {
    %c0_i32 = arith.constant 0 : i32
    %c0_i32_0 = arith.constant 0 : i32
    %c0_i32_1 = arith.constant 0 : i32
    return %c0_i32, %c0_i32_0 : i32, i32
  }
  func.func @transform_5(%arg0: i32, %arg1: i32) -> (i32, i32) {
    %c0_i32 = arith.constant 0 : i32
    %c0_i32_0 = arith.constant 0 : i32
    %c0_i32_1 = arith.constant 0 : i32
    return %c0_i32, %c0_i32_0 : i32, i32
  }
  func.func @transform_6(%arg0: i32, %arg1: i32) -> (i32, i32) {
    %c0_i32 = arith.constant 0 : i32
    %c0_i32_0 = arith.constant 0 : i32
    %c0_i32_1 = arith.constant 0 : i32
    return %c0_i32, %c0_i32_0 : i32, i32
  }
  func.func @transform_7(%arg0: i32, %arg1: i32) -> (i32, i32) {
    %c0_i32 = arith.constant 0 : i32
    %c0_i32_0 = arith.constant 0 : i32
    %c0_i32_1 = arith.constant 0 : i32
    return %c0_i32, %c0_i32_0 : i32, i32
  }
  func.func @transform_8(%arg0: i32, %arg1: i32) -> (i32, i32, i32) {
    %c0_i32 = arith.constant 0 : i32
    %c0_i32_0 = arith.constant 0 : i32
    return %arg0, %arg1, %c0_i32 : i32, i32, i32
  }
}

</mosaic_0001>

<llo_original>
// kernel: tpu_custom_call.1
$region0: #{tpu_custom_call.1}
  #allocation0 [shape = 'u32[]', space=smem, size = 0x4, offset = 0x4, fixed_abs, tag = 'smem constant byte address 0x4 - core index']
  #allocation1 [shape = 'u32[72,128]{1,0:T(1,128)}', space=vmem, size = 0x9000, scoped, tag = 'internal scratch']
  %s0 = inlined_call_operand.hbm [shape: f32[8,128], index: 0, kind: input, shape index: {}]
  %s1 = inlined_call_operand.hbm [shape: f32[8,128], index: 1, kind: output, shape index: {}]
  %s2 = sld [smem:[#allocation0]]
  $region18: #{tpu_custom_call.1} parent=0
    _
  %s4 = ssub.s32 1, %s2
  %s5 = scalar_select 0, %s4, %s2
  $region1: #{tpu_custom_call.1} parent=0
    #allocation2 [shape = 'u8[4096]{0}', space=vmem, size = 0x1000, scoped, tag = 'input window, operand 0, single buffered']
    #allocation3 [shape = 's32[1]{0}', space=sflag, size = 0x4, scoped, tag = 'scoped memory for tpu_custom_call.1']
    #allocation4 [shape = 's32[1]{0}', space=sflag, size = 0x4, scoped, tag = 'scoped memory for tpu_custom_call.1']
    #allocation5 [shape = 'u8[4096]{0}', space=vmem, size = 0x1000, scoped, tag = 'output window, operand 0, single buffered']
    %6 = vsyncpa [#allocation3], 0
    %7 = vsyncpa [#allocation4], 0
    // Predicated region
    $region2: #{tpu_custom_call.1} parent=1 // pred_check
      _
    $region3: #{tpu_custom_call.1} parent=1 // pred_check_branch
      %9 = sbr.rel (0) target = $region5
    $region4: #{tpu_custom_call.1} parent=1 // pred_region
      %11 = vsyncadd [#allocation3], 0
      %s13 = sshll.u32 %s0, 4
      %s14 = int_to_ptr.hbm [resolvable:$true] %s13
      %s15 = sshll.u32 [#allocation2], 4
      %s16 = int_to_ptr.vmem [resolvable:$true] %s15
      %18 = dma.hbm_to_vmem [thread:$0]  %s14, 128, %s16, [#allocation3]
    $region5: #{tpu_custom_call.1} parent=1 // pred_fallthru
      _
    // Predicated region
    $region6: #{tpu_custom_call.1} parent=1 // pred_check
      _
    $region7: #{tpu_custom_call.1} parent=1 // pred_check_branch
      %20 = sbr.rel (0) target = $region9
    $region8: #{tpu_custom_call.1} parent=1 // pred_region
      %22 = dma.done [#allocation3], 128
    $region9: #{tpu_custom_call.1} parent=1 // pred_fallthru
      _
    %v23 = vld [vmem:[#allocation2] sm:$0xff]
    %v24 = vadd.f32 %v23, 1.0
    %25 = vst [vmem:[#allocation5] sm:$0xff] %v24
    // Predicated region
    $region10: #{tpu_custom_call.1} parent=1 // pred_check
      _
    $region11: #{tpu_custom_call.1} parent=1 // pred_check_branch
      %27 = sbr.rel (0) target = $region13
    $region12: #{tpu_custom_call.1} parent=1 // pred_region
      %29 = vsyncadd [#allocation4], 0
      %s31 = sshll.u32 [#allocation5], 4
      %s32 = int_to_ptr.vmem [resolvable:$true] %s31
      %s33 = sshll.u32 %s1, 4
      %s34 = int_to_ptr.hbm [resolvable:$true] %s33
      %36 = dma.vmem_to_hbm [thread:$0]  %s32, 128, %s34, [#allocation4]
    $region13: #{tpu_custom_call.1} parent=1 // pred_fallthru
      _
    // Predicated region
    $region14: #{tpu_custom_call.1} parent=1 // pred_check
      _
    $region15: #{tpu_custom_call.1} parent=1 // pred_check_branch
      %38 = sbr.rel (0) target = $region17
    $region16: #{tpu_custom_call.1} parent=1 // pred_region
      %40 = dma.done [#allocation4], 128
    $region17: #{tpu_custom_call.1} parent=1 // pred_fallthru
      _
    %41 = vsyncpa [#allocation3], 1
    %42 = vsyncpa [#allocation4], 1

// kernel: tpu_custom_call.1
$region0: #{tpu_custom_call.1}
  #allocation0 [shape = 'u32[]', space=smem, size = 0x4, offset = 0x4, fixed_abs, tag = 'smem constant byte address 0x4 - core index']
  #allocation1 [shape = 'u32[72,128]{1,0:T(1,128)}', space=vmem, size = 0x9000, scoped, tag = 'internal scratch']
  #allocation2 [shape = 'bf16[8,64]{1,0:T(8,128)(2,1)}', space=vmem, size = 0x800, scoped, tag = 'scratch operand']
  %s0 = inlined_call_operand.hbm [shape: f32[2,8,32], index: 0, kind: input, shape index: {}]
  %s1 = inlined_call_operand.hbm [shape: f32[2,8,32], index: 1, kind: input, shape index: {}]
  %s2 = inlined_call_operand.hbm [shape: f32[2,1,8], index: 2, kind: input, shape index: {}]
  %s3 = inlined_call_operand.hbm [shape: bf16[32,32], index: 3, kind: input, shape index: {}]
  %s4 = inlined_call_operand.hbm [shape: bf16[32,64], index: 4, kind: input, shape index: {}]
  %s5 = inlined_call_operand.hbm [shape: bf16[32,32], index: 5, kind: input, shape index: {}]
  %s6 = inlined_call_operand.vmem [shape: f32[1,32], index: 6, kind: input, shape index: {}]
  %s7 = inlined_call_operand.vmem [shape: f32[1,32], index: 7, kind: input, shape index: {}]
  %s8 = inlined_call_operand.hbm [shape: f32[2,8,32], index: 8, kind: output, shape index: {}]
  %s9 = sld [smem:[#allocation0]]
  $region93: #{tpu_custom_call.1} parent=0
    _
  %s11 = ssub.s32 1, %s9
  %s12 = scalar_select 0, %s11, %s9
  $region1: #{tpu_custom_call.1} parent=0
    #allocation3 [shape = 'u8[8192]{0}', space=vmem, size = 0x2000, scoped, tag = 'input window, operand 0']
    #allocation4 [shape = 's32[2]{0}', space=sflag, size = 0x8, scoped, tag = 'scoped memory for tpu_custom_call.1']
    #allocation5 [shape = 's32[2]{0}', space=sflag, size = 0x8, scoped, tag = 'scoped memory for tpu_custom_call.1']
    #allocation6 [shape = 'u8[8192]{0}', space=vmem, size = 0x2000, scoped, tag = 'input window, operand 1']
    #allocation7 [shape = 's32[2]{0}', space=sflag, size = 0x8, scoped, tag = 'scoped memory for tpu_custom_call.1']
    #allocation8 [shape = 'u8[1024]{0}', space=vmem, size = 0x400, scoped, tag = 'input window, operand 2']
    #allocation9 [shape = 'u8[8192]{0}', space=vmem, size = 0x2000, scoped, tag = 'input window, operand 3, single buffered']
    #allocation10 [shape = 's32[1]{0}', space=sflag, size = 0x4, scoped, tag = 'scoped memory for tpu_custom_call.1']
    #allocation11 [shape = 'u8[8192]{0}', space=vmem, size = 0x2000, scoped, tag = 'input window, operand 4, single buffered']
    #allocation12 [shape = 'u8[8192]{0}', space=vmem, size = 0x2000, scoped, tag = 'input window, operand 5, single buffered']
    #allocation13 [shape = 's32[1]{0}', space=sflag, size = 0x4, scoped, tag = 'scoped memory for tpu_custom_call.1']
    #allocation14 [shape = 'u8[8192]{0}', space=vmem, size = 0x2000, scoped, tag = 'output window, operand 0']
    %13 = vsyncpa [#allocation4], 0
    %s14 = scalar_lea.sflag [#allocation4], 1
    %15 = vsyncpa %s14, 0
    %16 = vsyncpa [#allocation7], 0
    %s17 = scalar_lea.sflag [#allocation7], 1
    %18 = vsyncpa %s17, 0
    %19 = vsyncpa [#allocation10], 0
    %20 = vsyncpa [#allocation13], 0
    %21 = vsyncpa [#allocation5], 0
    %s22 = scalar_lea.sflag [#allocation5], 1
    %23 = vsyncpa %s22, 0
    loop: start=0, step=1, limit=4
    $region2: #{tpu_custom_call.1} parent=1 // loop_pre_header
      _
    $region3: #{tpu_custom_call.1} parent=1 // loop_header
      %s25 = sphi 0, %s29
      %p26 = scmp.ge.s32.totalorder %s25, 4
      %s32 = sphi 0, %s44
      %s33 = sphi 0, %s40
      %s34 = sphi 0, %s32
      %s35 = sphi 0, %s33
      %s36 = sphi 0, %s34
      %s37 = sphi 0, %s35
      %s49 = sphi 0, %s51
      %s52 = sphi 0, %s49
      %s53 = sphi 0, %s52
      %s69 = sphi 0, %s53
      %s75 = sphi 0, %s77
      %s78 = sphi 0, %s75
      %s79 = sphi 0, %s78
      %s95 = sphi 0, %s79
      %s101 = sphi 0, %s103
      %s104 = sphi 0, %s101
      %s105 = sphi 0, %s104
      %s121 = sphi 0, %s105
      %s125 = sphi 0, %s125
      %s127 = sphi 0, %s125
      %s128 = sphi 0, %s127
      %s142 = sphi 0, %s128
      %s146 = sphi 0, %s146
      %s148 = sphi 0, %s146
      %s149 = sphi 0, %s148
      %s163 = sphi 0, %s149
      %s167 = sphi 0, %s167
      %s169 = sphi 0, %s167
      %s170 = sphi 0, %s169
      %s184 = sphi 0, %s170
      %s188 = sphi 0, %s188
      %s190 = sphi 0, %s188
      %s191 = sphi 0, %s190
      %s205 = sphi 0, %s191
      %s209 = sphi 0, %s209
      %s211 = sphi 0, %s209
      %s212 = sphi 0, %s211
      %s226 = sphi 0, %s212
      %s234 = sphi 0, %s236
      %s237 = sphi 0, %s234
      %s238 = sphi 0, %s237
      %s254 = sphi 0, %s238
    $region4: #{tpu_custom_call.1} parent=1 // loop_header_branch
      %28 = sbr.rel (%p26) target = $region8
    $region5: #{tpu_custom_call.1} parent=1 // loop_body
      %s30 = ssub.s32 %s25, 1
      %s31 = ssub.s32 %s25, 2
      %s38 = sadd.s32 1, %s33
      %p39 = scmp.ge.s32.totalorder %s38, 1
      %s40 = scalar_select %p39, 0, %s38
      %s41 = sadd.s32 1, %s32
      %s42 = scalar_select %p39, %s41, %s32
      %p43 = scmp.ge.s32.totalorder %s42, 2
      %s44 = scalar_select %p43, 0, %s42
      %s45 = ssub.s32 %s32, %s44
      %s46 = ssub.s32 %s33, %s40
      %s47 = sor.u32 %s45, %s46
      %p48 = scmp.eq.s32.totalorder %s47, 0
      %s50 = sadd.s32 %s49, 1
      %s51 = scalar_select %p48, %s49, %s50
      %p54 = pneg %p48
      %p55 = scmp.eq.s32.totalorder %s25, 1
      %p56 = por %p54, %p55
      %p57 = scmp.ne.s32.totalorder %s49, %s52
      %p58 = scmp.eq.s32.totalorder %s25, 0
      %p59 = por %p57, %p58
      %p60 = scmp.ne.s32.totalorder %s49, %s52
      %p61 = scmp.eq.s32.totalorder %s30, 1
      %p62 = por %p60, %p61
      %p63 = scmp.ne.s32.totalorder %s52, %s53
      %p64 = scmp.eq.s32.totalorder %s30, 0
      %p65 = por %p63, %p64
      %p66 = scmp.ne.s32.totalorder %s52, %s53
      %p67 = scmp.eq.s32.totalorder %s31, 1
      %p68 = por %p66, %p67
      %p70 = scmp.ne.s32.totalorder %s53, %s69
      %p71 = scmp.eq.s32.totalorder %s31, 0
      %p72 = por %p70, %p71
      %s73 = ssub.s32 %s32, %s44
      %p74 = scmp.eq.s32.totalorder %s73, 0
      %s76 = sadd.s32 %s75, 1
      %s77 = scalar_select %p74, %s75, %s76
      %p80 = pneg %p74
      %p81 = scmp.eq.s32.totalorder %s25, 1
      %p82 = por %p80, %p81
      %p83 = scmp.ne.s32.totalorder %s75, %s78
      %p84 = scmp.eq.s32.totalorder %s25, 0
      %p85 = por %p83, %p84
      %p86 = scmp.ne.s32.totalorder %s75, %s78
      %p87 = scmp.eq.s32.totalorder %s30, 1
      %p88 = por %p86, %p87
      %p89 = scmp.ne.s32.totalorder %s78, %s79
      %p90 = scmp.eq.s32.totalorder %s30, 0
      %p91 = por %p89, %p90
      %p92 = scmp.ne.s32.totalorder %s78, %s79
      %p93 = scmp.eq.s32.totalorder %s31, 1
      %p94 = por %p92, %p93
      %p96 = scmp.ne.s32.totalorder %s79, %s95
      %p97 = scmp.eq.s32.totalorder %s31, 0
      %p98 = por %p96, %p97
      %s99 = ssub.s32 %s32, %s44
      %p100 = scmp.eq.s32.totalorder %s99, 0
      %s102 = sadd.s32 %s101, 1
      %s103 = scalar_select %p100, %s101, %s102
      %p106 = pneg %p100
      %p107 = scmp.eq.s32.totalorder %s25, 1
      %p108 = por %p106, %p107
      %p109 = scmp.ne.s32.totalorder %s101, %s104
      %p110 = scmp.eq.s32.totalorder %s25, 0
      %p111 = por %p109, %p110
      %p112 = scmp.ne.s32.totalorder %s101, %s104
      %p113 = scmp.eq.s32.totalorder %s30, 1
      %p114 = por %p112, %p113
      %p115 = scmp.ne.s32.totalorder %s104, %s105
      %p116 = scmp.eq.s32.totalorder %s30, 0
      %p117 = por %p115, %p116
      %p118 = scmp.ne.s32.totalorder %s104, %s105
      %p119 = scmp.eq.s32.totalorder %s31, 1
      %p120 = por %p118, %p119
      %p122 = scmp.ne.s32.totalorder %s105, %s121
      %p123 = scmp.eq.s32.totalorder %s31, 0
      %p124 = por %p122, %p123
      %s126 = sadd.s32 %s125, 1
      %p129 = scmp.eq.s32.totalorder %s25, 1
      %p130 = scmp.ne.s32.totalorder %s125, %s127
      %p131 = scmp.eq.s32.totalorder %s25, 0
      %p132 = por %p130, %p131
      %p133 = scmp.ne.s32.totalorder %s125, %s127
      %p134 = scmp.eq.s32.totalorder %s30, 1
      %p135 = por %p133, %p134
      %p136 = scmp.ne.s32.totalorder %s127, %s128
      %p137 = scmp.eq.s32.totalorder %s30, 0
      %p138 = por %p136, %p137
      %p139 = scmp.ne.s32.totalorder %s127, %s128
      %p140 = scmp.eq.s32.totalorder %s31, 1
      %p141 = por %p139, %p140
      %p143 = scmp.ne.s32.totalorder %s128, %s142
      %p144 = scmp.eq.s32.totalorder %s31, 0
      %p145 = por %p143, %p144
      %s147 = sadd.s32 %s146, 1
      %p150 = scmp.eq.s32.totalorder %s25, 1
      %p151 = scmp.ne.s32.totalorder %s146, %s148
      %p152 = scmp.eq.s32.totalorder %s25, 0
      %p153 = por %p151, %p152
      %p154 = scmp.ne.s32.totalorder %s146, %s148
      %p155 = scmp.eq.s32.totalorder %s30, 1
      %p156 = por %p154, %p155
      %p157 = scmp.ne.s32.totalorder %s148, %s149
      %p158 = scmp.eq.s32.totalorder %s30, 0
      %p159 = por %p157, %p158
      %p160 = scmp.ne.s32.totalorder %s148, %s149
      %p161 = scmp.eq.s32.totalorder %s31, 1
      %p162 = por %p160, %p161
      %p164 = scmp.ne.s32.totalorder %s149, %s163
      %p165 = scmp.eq.s32.totalorder %s31, 0
      %p166 = por %p164, %p165
      %s168 = sadd.s32 %s167, 1
      %p171 = scmp.eq.s32.totalorder %s25, 1
      %p172 = scmp.ne.s32.totalorder %s167, %s169
      %p173 = scmp.eq.s32.totalorder %s25, 0
      %p174 = por %p172, %p173
      %p175 = scmp.ne.s32.totalorder %s167, %s169
      %p176 = scmp.eq.s32.totalorder %s30, 1
      %p177 = por %p175, %p176
      %p178 = scmp.ne.s32.totalorder %s169, %s170
      %p179 = scmp.eq.s32.totalorder %s30, 0
      %p180 = por %p178, %p179
      %p181 = scmp.ne.s32.totalorder %s169, %s170
      %p182 = scmp.eq.s32.totalorder %s31, 1
      %p183 = por %p181, %p182
      %p185 = scmp.ne.s32.totalorder %s170, %s184
      %p186 = scmp.eq.s32.totalorder %s31, 0
      %p187 = por %p185, %p186
      %s189 = sadd.s32 %s188, 1
      %p192 = scmp.eq.s32.totalorder %s25, 1
      %p193 = scmp.ne.s32.totalorder %s188, %s190
      %p194 = scmp.eq.s32.totalorder %s25, 0
      %p195 = por %p193, %p194
      %p196 = scmp.ne.s32.totalorder %s188, %s190
      %p197 = scmp.eq.s32.totalorder %s30, 1
      %p198 = por %p196, %p197
      %p199 = scmp.ne.s32.totalorder %s190, %s191
      %p200 = scmp.eq.s32.totalorder %s30, 0
      %p201 = por %p199, %p200
      %p202 = scmp.ne.s32.totalorder %s190, %s191
      %p203 = scmp.eq.s32.totalorder %s31, 1
      %p204 = por %p202, %p203
      %p206 = scmp.ne.s32.totalorder %s191, %s205
      %p207 = scmp.eq.s32.totalorder %s31, 0
      %p208 = por %p206, %p207
      %s210 = sadd.s32 %s209, 1
      %p213 = scmp.eq.s32.totalorder %s25, 1
      %p214 = scmp.ne.s32.totalorder %s209, %s211
      %p215 = scmp.eq.s32.totalorder %s25, 0
      %p216 = por %p214, %p215
      %p217 = scmp.ne.s32.totalorder %s209, %s211
      %p218 = scmp.eq.s32.totalorder %s30, 1
      %p219 = por %p217, %p218
      %p220 = scmp.ne.s32.totalorder %s211, %s212
      %p221 = scmp.eq.s32.totalorder %s30, 0
      %p222 = por %p220, %p221
      %p223 = scmp.ne.s32.totalorder %s211, %s212
      %p224 = scmp.eq.s32.totalorder %s31, 1
      %p225 = por %p223, %p224
      %p227 = scmp.ne.s32.totalorder %s212, %s226
      %p228 = scmp.eq.s32.totalorder %s31, 0
      %p229 = por %p227, %p228
      %s230 = ssub.s32 %s32, %s44
      %s231 = ssub.s32 %s33, %s40
      %s232 = sor.u32 %s230, %s231
      %p233 = scmp.eq.s32.totalorder %s232, 0
      %s235 = sadd.s32 %s234, 1
      %s236 = scalar_select %p233, %s234, %s235
      %p239 = pneg %p233
      %p240 = scmp.eq.s32.totalorder %s25, 1
      %p241 = por %p239, %p240
      %p242 = scmp.ne.s32.totalorder %s234, %s237
      %p243 = scmp.eq.s32.totalorder %s25, 0
      %p244 = por %p242, %p243
      %p245 = scmp.ne.s32.totalorder %s234, %s237
      %p246 = scmp.eq.s32.totalorder %s30, 1
      %p247 = por %p245, %p246
      %p248 = scmp.ne.s32.totalorder %s237, %s238
      %p249 = scmp.eq.s32.totalorder %s30, 0
      %p250 = por %p248, %p249
      %p251 = scmp.ne.s32.totalorder %s237, %s238
      %p252 = scmp.eq.s32.totalorder %s31, 1
      %p253 = por %p251, %p252
      %p255 = scmp.ne.s32.totalorder %s238, %s254
      %p256 = scmp.eq.s32.totalorder %s31, 0
      %p257 = por %p255, %p256
      %p258 = scmp.le.s32.totalorder 1, %s25
      %p259 = scmp.lt.s32.totalorder %s25, 3
      %p260 = pnand %p258, %p259
      %p261 = pneg %p260
      // Predicated region
      $region9: #{tpu_custom_call.1} parent=5 // pred_check
        _
      $region10: #{tpu_custom_call.1} parent=5 // pred_check_branch
        %263 = sbr.rel (%p260) target = $region12
      $region11: #{tpu_custom_call.1} parent=5 // pred_region
        %s264 = ssub.s32 %s25, 1
        // Predicated region
        $region13: #{tpu_custom_call.1} parent=11 // pred_check
          %p265 = pneg %p138
        $region14: #{tpu_custom_call.1} parent=11 // pred_check_branch
          %267 = sbr.rel (%p265) target = $region16
        $region15: #{tpu_custom_call.1} parent=11 // pred_region
          %269 = vsyncadd [#allocation10], 0
          %s270 = sshll.u32 %s3, 4
          %s271 = int_to_ptr.hbm [resolvable:$true] %s270
          %s272 = sshll.u32 [#allocation9], 4
          %s273 = int_to_ptr.vmem [resolvable:$true] %s272
          %278 = dma.hbm_to_vmem [thread:$0]  %s271, 256, %s273, [#allocation10], 64, 64, 4
        $region16: #{tpu_custom_call.1} parent=11 // pred_fallthru
          _
        // Predicated region
        $region17: #{tpu_custom_call.1} parent=11 // pred_check
          %p279 = pneg %p159
        $region18: #{tpu_custom_call.1} parent=11 // pred_check_branch
          %281 = sbr.rel (%p279) target = $region20
        $region19: #{tpu_custom_call.1} parent=11 // pred_region
          %283 = vsyncadd [#allocation10], 0
          %s284 = sshll.u32 %s4, 4
          %s285 = int_to_ptr.hbm [resolvable:$true] %s284
          %s286 = sshll.u32 [#allocation11], 4
          %s287 = int_to_ptr.vmem [resolvable:$true] %s286
          %292 = dma.hbm_to_vmem [thread:$0]  %s285, 256, %s287, [#allocation10], 64, 64, 4
        $region20: #{tpu_custom_call.1} parent=11 // pred_fallthru
          _
        // Predicated region
        $region21: #{tpu_custom_call.1} parent=11 // pred_check
          %p293 = pneg %p180
        $region22: #{tpu_custom_call.1} parent=11 // pred_check_branch
          %295 = sbr.rel (%p293) target = $region24
        $region23: #{tpu_custom_call.1} parent=11 // pred_region
          %297 = vsyncadd [#allocation13], 0
          %s298 = sshll.u32 %s5, 4
          %s299 = int_to_ptr.hbm [resolvable:$true] %s298
          %s300 = sshll.u32 [#allocation12], 4
          %s301 = int_to_ptr.vmem [resolvable:$true] %s300
          %306 = dma.hbm_to_vmem [thread:$0]  %s299, 256, %s301, [#allocation13], 64, 64, 4
        $region24: #{tpu_custom_call.1} parent=11 // pred_fallthru
          _
        // Predicated region
        $region25: #{tpu_custom_call.1} parent=11 // pred_check
          %p307 = pneg %p201
        $region26: #{tpu_custom_call.1} parent=11 // pred_check_branch
          %309 = sbr.rel (%p307) target = $region28
        $region27: #{tpu_custom_call.1} parent=11 // pred_region
          _
        $region28: #{tpu_custom_call.1} parent=11 // pred_fallthru
          _
        // Predicated region
        $region29: #{tpu_custom_call.1} parent=11 // pred_check
          %p310 = pneg %p222
        $region30: #{tpu_custom_call.1} parent=11 // pred_check_branch
          %312 = sbr.rel (%p310) target = $region32
        $region31: #{tpu_custom_call.1} parent=11 // pred_region
          _
        $region32: #{tpu_custom_call.1} parent=11 // pred_fallthru
          _
      $region12: #{tpu_custom_call.1} parent=5 // pred_fallthru
        _
      %p313 = scmp.lt.s32.totalorder %s25, 2
      // Predicated region
      $region33: #{tpu_custom_call.1} parent=5 // pred_check
        %p314 = pneg %p313
      $region34: #{tpu_custom_call.1} parent=5 // pred_check_branch
        %316 = sbr.rel (%p314) target = $region36
      $region35: #{tpu_custom_call.1} parent=5 // pred_region
        // Predicated region
        $region37: #{tpu_custom_call.1} parent=35 // pred_check
          %p317 = pneg %p59
        $region38: #{tpu_custom_call.1} parent=35 // pred_check_branch
          %319 = sbr.rel (%p317) target = $region40
        $region39: #{tpu_custom_call.1} parent=35 // pred_region
          %s320 = sand.u32 %s49, 1
          %s321 = scalar_lea.sflag [#allocation4], %s320
          %s322 = sand.u32 %s49, 1
          %s323 = smul.addr %s322, 8
          %s324 = scalar_lea.vmem [#allocation3], %s323
          %326 = vsyncadd %s321, 0
          %s327 = sadd.s32 %s33, %s32
          %s328 = smul.addr %s327, 8
          %s329 = scalar_lea.hbm %s0, %s328
          %s331 = sshll.u32 %s329, 4
          %s332 = int_to_ptr.hbm [resolvable:$true] %s331
          %s333 = sshll.u32 %s324, 4
          %s334 = int_to_ptr.vmem [resolvable:$true] %s333
          %336 = dma.hbm_to_vmem [thread:$0]  %s332, 128, %s334, %s321
        $region40: #{tpu_custom_call.1} parent=35 // pred_fallthru
          _
        // Predicated region
        $region41: #{tpu_custom_call.1} parent=35 // pred_check
          %p337 = pneg %p85
        $region42: #{tpu_custom_call.1} parent=35 // pred_check_branch
          %339 = sbr.rel (%p337) target = $region44
        $region43: #{tpu_custom_call.1} parent=35 // pred_region
          %s340 = sand.u32 %s25, 1
          %s341 = scalar_lea.sflag [#allocation7], %s340
          %s342 = sand.u32 %s75, 1
          %s343 = smul.addr %s342, 8
          %s344 = scalar_lea.vmem [#allocation6], %s343
          %346 = vsyncadd %s341, 0
          %s347 = smul.addr %s32, 8
          %s348 = scalar_lea.hbm %s1, %s347
          %s350 = sshll.u32 %s348, 4
          %s351 = int_to_ptr.hbm [resolvable:$true] %s350
          %s352 = sshll.u32 %s344, 4
          %s353 = int_to_ptr.vmem [resolvable:$true] %s352
          %355 = dma.hbm_to_vmem [thread:$0]  %s351, 128, %s353, %s341
        $region44: #{tpu_custom_call.1} parent=35 // pred_fallthru
          _
        // Predicated region
        $region45: #{tpu_custom_call.1} parent=35 // pred_check
          %p356 = pneg %p111
        $region46: #{tpu_custom_call.1} parent=35 // pred_check_branch
          %358 = sbr.rel (%p356) target = $region48
        $region47: #{tpu_custom_call.1} parent=35 // pred_region
          %s359 = sand.u32 %s25, 1
          %s360 = scalar_lea.sflag [#allocation7], %s359
          %s361 = sand.u32 %s101, 1
          %s362 = scalar_lea.vmem [#allocation8], %s361
          %364 = vsyncadd %s360, 0
          %s365 = scalar_lea.hbm %s2, %s32
          %s367 = sshll.u32 %s365, 4
          %s368 = int_to_ptr.hbm [resolvable:$true] %s367
          %s369 = sshll.u32 %s362, 4
          %s370 = int_to_ptr.vmem [resolvable:$true] %s369
          %372 = dma.hbm_to_vmem [thread:$0]  %s368, 16, %s370, %s360
        $region48: #{tpu_custom_call.1} parent=35 // pred_fallthru
          _
      $region36: #{tpu_custom_call.1} parent=5 // pred_fallthru
        _
      %p373 = scmp.le.s32.totalorder 1, %s25
      %p374 = scmp.lt.s32.totalorder %s25, 3
      %p375 = pnand %p373, %p374
      %p376 = pneg %p375
      // Predicated region
      $region49: #{tpu_custom_call.1} parent=5 // pred_check
        _
      $region50: #{tpu_custom_call.1} parent=5 // pred_check_branch
        %378 = sbr.rel (%p375) target = $region52
      $region51: #{tpu_custom_call.1} parent=5 // pred_region
        %s379 = ssub.s32 %s25, 1
        %s380 = sand.u32 %s52, 1
        %s381 = scalar_lea.sflag [#allocation4], %s380
        %s382 = sand.u32 %s52, 1
        %s383 = smul.addr %s382, 8
        %s384 = scalar_lea.vmem [#allocation3], %s383
        // Predicated region
        $region53: #{tpu_custom_call.1} parent=51 // pred_check
          %p385 = pneg %p65
        $region54: #{tpu_custom_call.1} parent=51 // pred_check_branch
          %387 = sbr.rel (%p385) target = $region56
        $region55: #{tpu_custom_call.1} parent=51 // pred_region
          %389 = dma.done %s381, 128
        $region56: #{tpu_custom_call.1} parent=51 // pred_fallthru
          _
        %s390 = sand.u32 %s30, 1
        %s391 = scalar_lea.sflag [#allocation7], %s390
        %s392 = sand.u32 %s78, 1
        %s393 = smul.addr %s392, 8
        %s394 = scalar_lea.vmem [#allocation6], %s393
        // Predicated region
        $region57: #{tpu_custom_call.1} parent=51 // pred_check
          %p395 = pneg %p91
        $region58: #{tpu_custom_call.1} parent=51 // pred_check_branch
          %397 = sbr.rel (%p395) target = $region60
        $region59: #{tpu_custom_call.1} parent=51 // pred_region
          %399 = dma.done %s391, 128
        $region60: #{tpu_custom_call.1} parent=51 // pred_fallthru
          _
        %s400 = sand.u32 %s30, 1
        %s401 = scalar_lea.sflag [#allocation7], %s400
        %s402 = sand.u32 %s104, 1
        %s403 = scalar_lea.vmem [#allocation8], %s402
        // Predicated region
        $region61: #{tpu_custom_call.1} parent=51 // pred_check
          %p404 = pneg %p117
        $region62: #{tpu_custom_call.1} parent=51 // pred_check_branch
          %406 = sbr.rel (%p404) target = $region64
        $region63: #{tpu_custom_call.1} parent=51 // pred_region
          %408 = dma.done %s401, 16
        $region64: #{tpu_custom_call.1} parent=51 // pred_fallthru
          _
        // Predicated region
        $region65: #{tpu_custom_call.1} parent=51 // pred_check
          %p409 = pneg %p138
        $region66: #{tpu_custom_call.1} parent=51 // pred_check_branch
          %411 = sbr.rel (%p409) target = $region68
        $region67: #{tpu_custom_call.1} parent=51 // pred_region
          %413 = dma.done [#allocation10], 256
        $region68: #{tpu_custom_call.1} parent=51 // pred_fallthru
          _
        // Predicated region
        $region69: #{tpu_custom_call.1} parent=51 // pred_check
          %p414 = pneg %p159
        $region70: #{tpu_custom_call.1} parent=51 // pred_check_branch
          %416 = sbr.rel (%p414) target = $region72
        $region71: #{tpu_custom_call.1} parent=51 // pred_region
          %418 = dma.done [#allocation10], 256
        $region72: #{tpu_custom_call.1} parent=51 // pred_fallthru
          _
        // Predicated region
        $region73: #{tpu_custom_call.1} parent=51 // pred_check
          %p419 = pneg %p180
        $region74: #{tpu_custom_call.1} parent=51 // pred_check_branch
          %421 = sbr.rel (%p419) target = $region76
        $region75: #{tpu_custom_call.1} parent=51 // pred_region
          %423 = dma.done [#allocation13], 256
        $region76: #{tpu_custom_call.1} parent=51 // pred_fallthru
          _
        %s424 = sand.u32 %s52, 1
        %s425 = scalar_lea.sflag [#allocation4], %s424
        %s426 = sand.u32 %s52, 1
        %s427 = smul.addr %s426, 8
        %s428 = scalar_lea.vmem [#allocation3], %s427
        %p429 = pneg %p65
        %p430 = pneg %p62
        %s431 = sand.u32 %s30, 1
        %s432 = scalar_lea.sflag [#allocation7], %s431
        %s433 = sand.u32 %s78, 1
        %s434 = smul.addr %s433, 8
        %s435 = scalar_lea.vmem [#allocation6], %s434
        %p436 = pneg %p91
        %p437 = pneg %p88
        %s438 = sand.u32 %s30, 1
        %s439 = scalar_lea.sflag [#allocation7], %s438
        %s440 = sand.u32 %s104, 1
        %s441 = scalar_lea.vmem [#allocation8], %s440
        %p442 = pneg %p117
        %p443 = pneg %p114
        %p444 = pneg %p138
        %p445 = pneg %p135
        %p446 = pneg %p159
        %p447 = pneg %p156
        %p448 = pneg %p180
        %p449 = pneg %p177
        %p450 = pneg %p201
        %p451 = pneg %p198
        %p452 = pneg %p222
        %p453 = pneg %p219
        %p454 = pneg %p250
        %p455 = pneg %p247
        %s456 = sand.u32 %s237, 1
        %s457 = scalar_lea.sflag [#allocation5], %s456
        %s458 = sand.u32 %s237, 1
        %s459 = smul.addr %s458, 8
        %s460 = scalar_lea.vmem [#allocation14], %s459
        %p462 = scmp.eq.s32.totalorder %s35, 0
        // Predicated region
        $region77: #{tpu_custom_call.1} parent=51 // pred_check
          %p463 = pneg %p462
        $region78: #{tpu_custom_call.1} parent=51 // pred_check_branch
          %465 = sbr.rel (%p463) target = $region80
        $region79: #{tpu_custom_call.1} parent=51 // pred_region
          %v466 = vld [vmem:[%s394] sm:$0xff]
          %v467 = vpack.c.bf16 %v466, %v466
          %v468 = vld [vmem:[#allocation11] sm:$0xf]
          %v469 = vld [vmem:[#allocation11 + $0x4] sm:$0xf]
          %v470 = vld [vmem:[#allocation11 + $0x8] sm:$0xf]
          %v471 = vld [vmem:[#allocation11 + $0xc] sm:$0xf]
          %v476 = vunpack.c.l.b16 %v468
          %v477 = vunpack.c.l.b16 %v469
          %v478 = vunpack.c.l.b16 %v470
          %v479 = vunpack.c.l.b16 %v471
          %v480 = vpack.c.b16 %v477, %v476
          %v481 = vpack.c.b16 %v479, %v478
          %vm484 = vcmask 261120
          %v486 = vsel %vm484, %v467, 0
          %488 = vmatpush.bf16.msra.mxu0 0
          %489 = vmatpush.bf16.msra.mxu0 0
          %490 = vmatpush.bf16.msra.mxu0 0
          %491 = vmatpush.bf16.msra.mxu0 0
          %492 = vmatpush.bf16.msra.mxu0 0
          %493 = vmatpush.bf16.msra.mxu0 0
          %494 = vmatpush.bf16.msra.mxu0 %v481
          %495 = vmatpush.bf16.msra.mxu0 %v480
          %496 = vmatmul.bf16.gmra.mxu0 %v486
          %v497 = vpop.f32.mrf.mxu0
          %v498 = vadd.f32 0.0, %v497
          %v499 = vpop.f32.mrf.mxu0
          %500 = vdwg.mxu0
          %v501 = vpack.c.bf16 %v498, %v498
          %vm502 = vcmask 519168
          %503 = vst.msk [vmem:[#allocation2] sm:$0xf] %vm502, %v501
        $region80: #{tpu_custom_call.1} parent=51 // pred_fallthru
          _
        %v504 = vld [vmem:[%s384] sm:$0xff]
        %v505 = vpack.c.bf16 %v504, %v504
        %v506 = vld [vmem:[#allocation9] sm:$0xf]
        %v507 = vld [vmem:[#allocation9 + $0x4] sm:$0xf]
        %v508 = vld [vmem:[#allocation9 + $0x8] sm:$0xf]
        %v509 = vld [vmem:[#allocation9 + $0xc] sm:$0xf]
        %v514 = vunpack.c.l.b16 %v506
        %v515 = vunpack.c.l.b16 %v507
        %v516 = vunpack.c.l.b16 %v508
        %v517 = vunpack.c.l.b16 %v509
        %v518 = vpack.c.b16 %v515, %v514
        %v519 = vpack.c.b16 %v517, %v516
        %vm522 = vcmask 261120
        %v524 = vsel %vm522, %v505, 0
        %526 = vmatpush.bf16.msra.mxu0 0
        %527 = vmatpush.bf16.msra.mxu0 0
        %528 = vmatpush.bf16.msra.mxu0 0
        %529 = vmatpush.bf16.msra.mxu0 0
        %530 = vmatpush.bf16.msra.mxu0 0
        %531 = vmatpush.bf16.msra.mxu0 0
        %532 = vmatpush.bf16.msra.mxu0 %v519
        %533 = vmatpush.bf16.msra.mxu0 %v518
        %534 = vmatmul.bf16.gmra.mxu0 %v524
        %v535 = vpop.f32.mrf.mxu0
        %v536 = vadd.f32 0.0, %v535
        %v537 = vpop.f32.mrf.mxu0
        %538 = vdwg.mxu0
        %v539 = vmul.f32 %v536, 0.35355338
        %v540 = vpack.c.bf16 %v539, %v539
        %v541 = vld [vmem:[%s403] sm:$0x1]
        %vm542 = vcmp.gt.f32.partialorder %v541, 0.0
        %v543 = vsel %vm542, 1, 0
        %v544 = vperm.slane %v543, 0
        %vm545 = vcmp.eq.s32.totalorder %v544, 1
        %v546 = vsel %vm545, 0.0, -1e+30
        %v547 = vld [vmem:[#allocation2] sm:$0xf]
        %vm548 = vcmask 64512
        %v550 = vsel %vm548, %v540, 0
        %v553 = vsel %vm548, %v547, 0
        %555 = vmatpush.bf16.xpose.msra.mxu0 0
        %556 = vmatpush.bf16.xpose.msra.mxu0 0
        %557 = vmatpush.bf16.xpose.msra.mxu0 0
        %558 = vmatpush.bf16.xpose.msra.mxu0 0
        %559 = vmatpush.bf16.xpose.msra.mxu0 0
        %560 = vmatpush.bf16.xpose.msra.mxu0 0
        %561 = vmatpush.bf16.xpose.msra.mxu0 0
        %562 = vmatpush.bf16.xpose.msra.mxu0 %v553
        %563 = vmatmul.bf16.gmra.mxu0 %v550
        %v564 = vpop.f32.mrf.mxu0
        %v565 = vadd.f32 %v546, %v564
        %v566 = vpop.f32.mrf.mxu0
        %567 = vdwg.mxu0
        %v568 = vsel %vm548, %v565, -inf
        %569 = vmax.xlane.f32.xlu0 %v568
        %v570 = vpop.xlane.xlu0 %569
        %v571 = vsub.f32 %v565, %v570
        %v572 = vmul.f32 %v571, 1.442695
        %v573 = vpow.pop %v572
        %v574 = vsel %vm548, %v573, 0.0
        %575 = vadd.xlane.f32.xlu0 %v574
        %v576 = vpop.xlane.xlu0 %575
        %v577 = vrcp.pop %v576
        %v578 = vmul.f32 %v573, %v577
        %v579 = vpack.c.bf16 %v578, %v578
        %v581 = vunpack.c.l.b16 %v547
        %v582 = vpack.c.b16 %v581, %v581
        %583 = vrot.lane.b32.xlu0 %v582, 96
        %v584 = vpop.permute.xlu0 %583
        %v586 = vsel %vm548, %v579, 0
        %vm588 = vcmask 1043456
        %v590 = vsel %vm588, %v584, 0
        %592 = vmatpush.bf16.msra.mxu0 0
        %593 = vmatpush.bf16.msra.mxu0 0
        %594 = vmatpush.bf16.msra.mxu0 0
        %595 = vmatpush.bf16.msra.mxu0 0
        %596 = vmatpush.bf16.msra.mxu0 0
        %597 = vmatpush.bf16.msra.mxu0 0
        %598 = vmatpush.bf16.msra.mxu0 0
        %599 = vmatpush.bf16.msra.mxu0 %v590
        %600 = vmatmul.bf16.gmra.mxu0 %v586
        %v601 = vpop.f32.mrf.mxu0
        %v602 = vadd.f32 0.0, %v601
        %v603 = vpop.f32.mrf.mxu0
        %604 = vdwg.mxu0
        %v606 = vunpack.c.l.b16 %v540
        %v607 = vpack.c.b16 %v606, %v606
        %608 = vrot.lane.b32.xlu0 %v607, 120
        %v609 = vpop.permute.xlu0 %608
        %610 = vrot.lane.b32.xlu0 %v582, 120
        %v611 = vpop.permute.xlu0 %610
        %v613 = vsel %vm548, %v609, 0
        %v616 = vsel %vm548, %v611, 0
        %618 = vmatpush.bf16.xpose.msra.mxu0 0
        %619 = vmatpush.bf16.xpose.msra.mxu0 0
        %620 = vmatpush.bf16.xpose.msra.mxu0 0
        %621 = vmatpush.bf16.xpose.msra.mxu0 0
        %622 = vmatpush.bf16.xpose.msra.mxu0 0
        %623 = vmatpush.bf16.xpose.msra.mxu0 0
        %624 = vmatpush.bf16.xpose.msra.mxu0 0
        %625 = vmatpush.bf16.xpose.msra.mxu0 %v616
        %626 = vmatmul.bf16.gmra.mxu0 %v613
        %v627 = vpop.f32.mrf.mxu0
        %v628 = vadd.f32 %v546, %v627
        %v629 = vpop.f32.mrf.mxu0
        %630 = vdwg.mxu0
        %v631 = vsel %vm548, %v628, -inf
        %632 = vmax.xlane.f32.xlu0 %v631
        %v633 = vpop.xlane.xlu0 %632
        %v634 = vsub.f32 %v628, %v633
        %v635 = vmul.f32 %v634, 1.442695
        %v636 = vpow.pop %v635
        %v637 = vsel %vm548, %v636, 0.0
        %638 = vadd.xlane.f32.xlu0 %v637
        %v639 = vpop.xlane.xlu0 %638
        %v640 = vrcp.pop %v639
        %v641 = vmul.f32 %v636, %v640
        %v642 = vpack.c.bf16 %v641, %v641
        %643 = vrot.lane.b32.xlu0 %v582, 88
        %v644 = vpop.permute.xlu0 %643
        %v646 = vsel %vm548, %v642, 0
        %v649 = vsel %vm588, %v644, 0
        %651 = vmatpush.bf16.msra.mxu0 0
        %652 = vmatpush.bf16.msra.mxu0 0
        %653 = vmatpush.bf16.msra.mxu0 0
        %654 = vmatpush.bf16.msra.mxu0 0
        %655 = vmatpush.bf16.msra.mxu0 0
        %656 = vmatpush.bf16.msra.mxu0 0
        %657 = vmatpush.bf16.msra.mxu0 0
        %658 = vmatpush.bf16.msra.mxu0 %v649
        %659 = vmatmul.bf16.gmra.mxu0 %v646
        %v660 = vpop.f32.mrf.mxu0
        %v661 = vadd.f32 0.0, %v660
        %v662 = vpop.f32.mrf.mxu0
        %663 = vdwg.mxu0
        %664 = vrot.lane.b32.xlu0 %v607, 112
        %v665 = vpop.permute.xlu0 %664
        %666 = vrot.lane.b32.xlu0 %v582, 112
        %v667 = vpop.permute.xlu0 %666
        %v669 = vsel %vm548, %v665, 0
        %v672 = vsel %vm548, %v667, 0
        %674 = vmatpush.bf16.xpose.msra.mxu0 0
        %675 = vmatpush.bf16.xpose.msra.mxu0 0
        %676 = vmatpush.bf16.xpose.msra.mxu0 0
        %677 = vmatpush.bf16.xpose.msra.mxu0 0
        %678 = vmatpush.bf16.xpose.msra.mxu0 0
        %679 = vmatpush.bf16.xpose.msra.mxu0 0
        %680 = vmatpush.bf16.xpose.msra.mxu0 0
        %681 = vmatpush.bf16.xpose.msra.mxu0 %v672
        %682 = vmatmul.bf16.gmra.mxu0 %v669
        %v683 = vpop.f32.mrf.mxu0
        %v684 = vadd.f32 %v546, %v683
        %v685 = vpop.f32.mrf.mxu0
        %686 = vdwg.mxu0
        %v687 = vsel %vm548, %v684, -inf
        %688 = vmax.xlane.f32.xlu0 %v687
        %v689 = vpop.xlane.xlu0 %688
        %v690 = vsub.f32 %v684, %v689
        %v691 = vmul.f32 %v690, 1.442695
        %v692 = vpow.pop %v691
        %v693 = vsel %vm548, %v692, 0.0
        %694 = vadd.xlane.f32.xlu0 %v693
        %v695 = vpop.xlane.xlu0 %694
        %v696 = vrcp.pop %v695
        %v697 = vmul.f32 %v692, %v696
        %v698 = vpack.c.bf16 %v697, %v697
        %699 = vrot.lane.b32.xlu0 %v582, 80
        %v700 = vpop.permute.xlu0 %699
        %v702 = vsel %vm548, %v698, 0
        %v705 = vsel %vm588, %v700, 0
        %707 = vmatpush.bf16.msra.mxu0 0
        %708 = vmatpush.bf16.msra.mxu0 0
        %709 = vmatpush.bf16.msra.mxu0 0
        %710 = vmatpush.bf16.msra.mxu0 0
        %711 = vmatpush.bf16.msra.mxu0 0
        %712 = vmatpush.bf16.msra.mxu0 0
        %713 = vmatpush.bf16.msra.mxu0 0
        %714 = vmatpush.bf16.msra.mxu0 %v705
        %715 = vmatmul.bf16.gmra.mxu0 %v702
        %v716 = vpop.f32.mrf.mxu0
        %v717 = vadd.f32 0.0, %v716
        %v718 = vpop.f32.mrf.mxu0
        %719 = vdwg.mxu0
        %720 = vrot.lane.b32.xlu0 %v607, 104
        %v721 = vpop.permute.xlu0 %720
        %722 = vrot.lane.b32.xlu0 %v582, 104
        %v723 = vpop.permute.xlu0 %722
        %v725 = vsel %vm548, %v721, 0
        %v728 = vsel %vm548, %v723, 0
        %730 = vmatpush.bf16.xpose.msra.mxu0 0
        %731 = vmatpush.bf16.xpose.msra.mxu0 0
        %732 = vmatpush.bf16.xpose.msra.mxu0 0
        %733 = vmatpush.bf16.xpose.msra.mxu0 0
        %734 = vmatpush.bf16.xpose.msra.mxu0 0
        %735 = vmatpush.bf16.xpose.msra.mxu0 0
        %736 = vmatpush.bf16.xpose.msra.mxu0 0
        %737 = vmatpush.bf16.xpose.msra.mxu0 %v728
        %738 = vmatmul.bf16.gmra.mxu0 %v725
        %v739 = vpop.f32.mrf.mxu0
        %v740 = vadd.f32 %v546, %v739
        %v741 = vpop.f32.mrf.mxu0
        %742 = vdwg.mxu0
        %v743 = vsel %vm548, %v740, -inf
        %744 = vmax.xlane.f32.xlu0 %v743
        %v745 = vpop.xlane.xlu0 %744
        %v746 = vsub.f32 %v740, %v745
        %v747 = vmul.f32 %v746, 1.442695
        %v748 = vpow.pop %v747
        %v749 = vsel %vm548, %v748, 0.0
        %750 = vadd.xlane.f32.xlu0 %v749
        %v751 = vpop.xlane.xlu0 %750
        %v752 = vrcp.pop %v751
        %v753 = vmul.f32 %v748, %v752
        %v754 = vpack.c.bf16 %v753, %v753
        %755 = vrot.lane.b32.xlu0 %v582, 72
        %v756 = vpop.permute.xlu0 %755
        %v758 = vsel %vm548, %v754, 0
        %v761 = vsel %vm588, %v756, 0
        %763 = vmatpush.bf16.msra.mxu0 0
        %764 = vmatpush.bf16.msra.mxu0 0
        %765 = vmatpush.bf16.msra.mxu0 0
        %766 = vmatpush.bf16.msra.mxu0 0
        %767 = vmatpush.bf16.msra.mxu0 0
        %768 = vmatpush.bf16.msra.mxu0 0
        %769 = vmatpush.bf16.msra.mxu0 0
        %770 = vmatpush.bf16.msra.mxu0 %v761
        %771 = vmatmul.bf16.gmra.mxu0 %v758
        %v772 = vpop.f32.mrf.mxu0
        %v773 = vadd.f32 0.0, %v772
        %v774 = vpop.f32.mrf.mxu0
        %775 = vdwg.mxu0
        %777 = vrot.lane.b32.xlu0 %v661, 8
        %v778 = vpop.permute.xlu0 %777
        %781 = vrot.lane.b32.xlu0 %v717, 16
        %v782 = vpop.permute.xlu0 %781
        %785 = vrot.lane.b32.xlu0 %v773, 24
        %v786 = vpop.permute.xlu0 %785
        %v788 = vsel %vm548, %v602, %v778
        %vm789 = vcmask 130048
        %v790 = vsel %vm789, %v788, %v782
        %vm791 = vcmask 195584
        %v792 = vsel %vm791, %v790, %v786
        %v793 = vpack.c.bf16 %v792, %v792
        %v794 = vld [vmem:[#allocation12] sm:$0xf]
        %v795 = vld [vmem:[#allocation12 + $0x4] sm:$0xf]
        %v796 = vld [vmem:[#allocation12 + $0x8] sm:$0xf]
        %v797 = vld [vmem:[#allocation12 + $0xc] sm:$0xf]
        %v802 = vunpack.c.l.b16 %v794
        %v803 = vunpack.c.l.b16 %v795
        %v804 = vunpack.c.l.b16 %v796
        %v805 = vunpack.c.l.b16 %v797
        %v806 = vpack.c.b16 %v803, %v802
        %v807 = vpack.c.b16 %v805, %v804
        %v811 = vsel %vm522, %v793, 0
        %813 = vmatpush.bf16.msra.mxu0 0
        %814 = vmatpush.bf16.msra.mxu0 0
        %815 = vmatpush.bf16.msra.mxu0 0
        %816 = vmatpush.bf16.msra.mxu0 0
        %817 = vmatpush.bf16.msra.mxu0 0
        %818 = vmatpush.bf16.msra.mxu0 0
        %819 = vmatpush.bf16.msra.mxu0 %v807
        %820 = vmatpush.bf16.msra.mxu0 %v806
        %821 = vmatmul.bf16.gmra.mxu0 %v811
        %v822 = vpop.f32.mrf.mxu0
        %v823 = vadd.f32 0.0, %v822
        %v824 = vpop.f32.mrf.mxu0
        %825 = vdwg.mxu0
        %v826 = vadd.f32 %v504, %v823
        %v827 = vsel %vm522, %v826, 0.0
        %828 = vadd.xlane.f32.xlu0 %v827
        %v829 = vpop.xlane.xlu0 %828
        %v830 = vrcp.pop 32.0
        %v831 = vmul.f32 32.0, %v830
        %v832 = vsub.f32 1.0, %v831
        %v833 = vmul.f32 %v830, %v832
        %v834 = vadd.f32 %v830, %v833
        %vm835 = vweird.f32 %v830
        %v836 = vsel %vm835, %v830, %v834
        %v837 = vmul.f32 %v829, %v836
        %v838 = vsub.f32 %v826, %v837
        %v839 = vmul.f32 %v838, %v838
        %v840 = vsel %vm522, %v839, 0.0
        %841 = vadd.xlane.f32.xlu0 %v840
        %v842 = vpop.xlane.xlu0 %841
        %v843 = vmul.f32 %v842, %v836
        %v844 = vadd.f32 %v843, 1e-05
        %v845 = vrsqrt.pop %v844
        %v846 = vmul.f32 %v845, %v844
        %v847 = vmul.f32 %v846, %v845
        %v848 = vmul.f32 0.5, %v847
        %v849 = vsub.f32 1.5, %v848
        %v850 = vmul.f32 %v845, %v849
        %vm851 = vweird.f32 %v844
        %vm852 = vweird.f32 %v845
        %vm853 = vmor %vm851, %vm852
        %v854 = vsel %vm853, %v845, %v850
        %v855 = vmul.f32 %v838, %v854
        %v856 = vld [vmem:[%s6] sm:$0x1]
        %v858 = vperm.slane %v856, 0
        %v860 = vmul.f32 %v855, %v858
        %v861 = vld [vmem:[%s7] sm:$0x1]
        %v863 = vperm.slane %v861, 0
        %v865 = vadd.f32 %v860, %v863
        %866 = vst.msk [vmem:[%s460] sm:$0xff] %vm522, %v865
        %s867 = sand.u32 %s237, 1
        %s868 = scalar_lea.sflag [#allocation5], %s867
        %s869 = sand.u32 %s237, 1
        %s870 = smul.addr %s869, 8
        %s871 = scalar_lea.vmem [#allocation14], %s870
        // Predicated region
        $region81: #{tpu_custom_call.1} parent=51 // pred_check
          %p872 = pneg %p247
        $region82: #{tpu_custom_call.1} parent=51 // pred_check_branch
          %874 = sbr.rel (%p872) target = $region84
        $region83: #{tpu_custom_call.1} parent=51 // pred_region
          %876 = vsyncadd %s868, 0
          %s877 = sadd.s32 %s35, %s34
          %s878 = smul.addr %s877, 8
          %s879 = scalar_lea.hbm %s8, %s878
          %s881 = sshll.u32 %s871, 4
          %s882 = int_to_ptr.vmem [resolvable:$true] %s881
          %s883 = sshll.u32 %s879, 4
          %s884 = int_to_ptr.hbm [resolvable:$true] %s883
          %886 = dma.vmem_to_hbm [thread:$0]  %s882, 128, %s884, %s868
        $region84: #{tpu_custom_call.1} parent=51 // pred_fallthru
          _
      $region52: #{tpu_custom_call.1} parent=5 // pred_fallthru
        _
      %p887 = scmp.le.s32.totalorder 2, %s25
      // Predicated region
      $region85: #{tpu_custom_call.1} parent=5 // pred_check
        %p888 = pneg %p887
      $region86: #{tpu_custom_call.1} parent=5 // pred_check_branch
        %890 = sbr.rel (%p888) target = $region88
      $region87: #{tpu_custom_call.1} parent=5 // pred_region
        %s891 = ssub.s32 %s25, 2
        // Predicated region
        $region89: #{tpu_custom_call.1} parent=87 // pred_check
          %p892 = pneg %p253
        $region90: #{tpu_custom_call.1} parent=87 // pred_check_branch
          %894 = sbr.rel (%p892) target = $region92
        $region91: #{tpu_custom_call.1} parent=87 // pred_region
          %s895 = sand.u32 %s238, 1
          %s896 = scalar_lea.sflag [#allocation5], %s895
          %s897 = sand.u32 %s238, 1
          %s898 = smul.addr %s897, 8
          %s899 = scalar_lea.vmem [#allocation14], %s898
          %901 = dma.done %s896, 128
        $region92: #{tpu_custom_call.1} parent=87 // pred_fallthru
          _
      $region88: #{tpu_custom_call.1} parent=5 // pred_fallthru
        _
    $region6: #{tpu_custom_call.1} parent=1 // loop_footer
      %s29 = sadd.s32 1, %s25
    $region7: #{tpu_custom_call.1} parent=1 // loop_footer_branch
      %24 = sbr.rel target = $region3
    $region8: #{tpu_custom_call.1} parent=1 // loop_exit
      _
    %902 = vsyncpa [#allocation4], 1
    %s903 = scalar_lea.sflag [#allocation4], 1
    %904 = vsyncpa %s903, 1
    %905 = vsyncpa [#allocation7], 1
    %s906 = scalar_lea.sflag [#allocation7], 1
    %907 = vsyncpa %s906, 1
    %908 = vsyncpa [#allocation10], 1
    %909 = vsyncpa [#allocation13], 1
    %910 = vsyncpa [#allocation5], 1
    %s911 = scalar_lea.sflag [#allocation5], 1
    %912 = vsyncpa %s911, 1

</llo_original>
